<compile_context>
chip_gen: v7x
topology: tpu7x:2x2x1
jax: 0.10.0
libtpu: 0.0.40
codegen_flags: <defaults>
</compile_context>

<pallas_src>
import functools

import jax
import jax.numpy as jnp
from jax.experimental import pallas as pl
from jax.experimental.pallas import tpu as pltpu


def _gat_block_kernel(x_ref, adj_ref, w_ref, a1_ref, a2_ref, o_ref, *,
                      alpha, nhid, heads_per_step, mm_dtype):
    x = x_ref[...]                      # (N, nfeat)  f32
    adj = adj_ref[...]                  # (N, N)      bf16 (binary pattern)
    mask = adj > 0                      # shared by every head in this step

    # One lane-dense MXU matmul covering every head handled by this grid step:
    #   wh_all[:, h*nhid:(h+1)*nhid] == x @ W_h
    wh_all = jnp.dot(x, w_ref[...], preferred_element_type=jnp.float32)

    n = x.shape[0]
    ones_col = jnp.ones((n, 1), dtype=mm_dtype)   # row-sum (denom) via MXU

    for i in range(heads_per_step):     # unrolled at trace time
        lo = i * nhid
        wh = wh_all[:, lo:lo + nhid]    # (N, nhid)  f32
        a1 = a1_ref[i]                  # (1, nhid)
        a2 = a2_ref[i]                  # (1, nhid)

        # e[r, c] = Wh_r . a1 + Wh_c . a2  (factorized; no (N,N,2*nhid) blowup)
        f1 = jnp.sum(wh * a1, axis=1, keepdims=True)                   # (N, 1)
        f2 = jnp.einsum("hd,nd->hn", a2, wh,
                        preferred_element_type=jnp.float32)            # (1, N)
        e = f1 + f2                                                    # (N, N)

        # LeakyReLU, adjacency mask, numerically-stable row softmax (dim=1)
        # with the normalization deferred until after the second matmul.
        e = jnp.where(e > 0.0, e, alpha * e)
        e = jnp.where(mask, e, -9e15)
        m = jnp.max(e, axis=1, keepdims=True)
        p = jnp.exp(e - m)                                             # (N, N)

        # Second matmul (and the row-sum) in bf16 on the MXU, f32 accumulate.
        p_mm = p.astype(mm_dtype)
        wh_mm = wh.astype(mm_dtype)
        pw = jnp.dot(p_mm, wh_mm, preferred_element_type=jnp.float32)  # (N, nhid)
        denom = jnp.dot(p_mm, ones_col,
                        preferred_element_type=jnp.float32)            # (N, 1)
        # TODO(synk): training-mode F.dropout(attention) not implemented
        # (inference semantics: identity).
        hp = pw * pl.reciprocal(denom, approx=True)

        # ELU (concat=True); min(.,0) keeps the unselected exp branch finite.
        out_h = jnp.where(hp > 0.0, hp, jnp.exp(jnp.minimum(hp, 0.0)) - 1.0)
        # Store this head's slab directly into the output block.
        o_ref[:, lo:lo + nhid] = out_h.astype(o_ref.dtype)


def _device_kind():
    try:
        return jax.devices()[0].device_kind.lower()
    except Exception:
        return ""


def _choose_heads_per_step(nheads, nhid):
    # Only v7x has 2 TensorCores worth feeding with >=2 "parallel" grid steps;
    # on v5e/v6e the grid is a serial loop, so splitting heads only adds
    # per-step overhead and narrows the output slab.  Require the per-step
    # output slab to stay lane-dense (multiple of 128 lanes) before splitting.
    kind = _device_kind()
    two_tensorcores = ("v7" in kind) or ("7x" in kind)
    if two_tensorcores and nheads % 2 == 0:
        hps = nheads // 2
        if (hps * nhid) % 128 == 0:
            return hps
    return nheads


def _vmem_limit_bytes():
    # ~75% of physical VMEM: ~96 MiB on v5e/v6e (128 MiB physical), ~48 MiB on
    # v7x (64 MiB).  Falls back to a conservative 32 MiB if the query fails.
    try:
        cap = pltpu.get_tpu_info().vmem_capacity_bytes
        return int(cap * 3 // 4)
    except Exception:
        return 32 * 1024 * 1024


def gat_block(x, adj, W, a, *, alpha, dropout=0.0, heads_per_step=None,
              use_bf16_matmul=True):
    """Pallas implementation of GAT_block.forward (eval mode).

    x   : (N, nfeat) f32
    adj : (N, N)     adjacency (only its >0 pattern is used)
    W   : (nheads, nfeat, nhid)  stacked per-head weight matrices
    a   : (nheads, 2*nhid, 1)    stacked per-head attention vectors
    returns (N, nheads*nhid) f32  ==  torch.cat([head_h(x, adj)], dim=1)
    """
    # TODO(synk): training-mode input dropout F.dropout(x, dropout) not
    # implemented; inference mode => identity.
    del dropout

    N, nfeat = x.shape
    nheads, _, nhid = W.shape

    if heads_per_step is None:
        heads_per_step = _choose_heads_per_step(nheads, nhid)
    assert nheads % heads_per_step == 0
    nsteps = nheads // heads_per_step
    hps_cols = heads_per_step * nhid

    # Fuse per-head weights into one (nfeat, nheads*nhid) slab so each grid
    # step issues a single lane-dense MXU matmul for all of its heads.
    w_slab = jnp.transpose(W, (1, 0, 2)).reshape(nfeat, nheads * nhid)

    # Split the attention vector a = [a1; a2] into per-head row vectors.
    a1 = a[:, :nhid, 0][:, None, :]      # (nheads, 1, nhid)
    a2 = a[:, nhid:, 0][:, None, :]      # (nheads, 1, nhid)

    # adj only feeds a >0 compare (binary adjacency) -> ship it as bf16 to
    # halve the dominant (N, N) HBM stream and VMEM block.
    adj_in = adj.astype(jnp.bfloat16)

    mm_dtype = jnp.bfloat16 if use_bf16_matmul else jnp.float32

    kernel = functools.partial(_gat_block_kernel, alpha=float(alpha),
                               nhid=nhid, heads_per_step=heads_per_step,
                               mm_dtype=mm_dtype)

    out = pl.pallas_call(
        kernel,
        out_shape=jax.ShapeDtypeStruct((N, nheads * nhid), x.dtype),
        grid_spec=pltpu.PrefetchScalarGridSpec(
            num_scalar_prefetch=0,
            grid=(nsteps,),
            in_specs=[
                # x and adj: constant index_map -> fetched once, VMEM resident.
                pl.BlockSpec((N, nfeat), lambda s: (0, 0)),
                pl.BlockSpec((N, N), lambda s: (0, 0)),
                # Fused weight slab + per-head attention vectors for this step.
                pl.BlockSpec((nfeat, hps_cols), lambda s: (0, s)),
                pl.BlockSpec((heads_per_step, 1, nhid), lambda s: (s, 0, 0)),
                pl.BlockSpec((heads_per_step, 1, nhid), lambda s: (s, 0, 0)),
            ],
            # Output written directly in its final (N, nheads*nhid) layout:
            # each step owns a contiguous, lane-dense column slab.
            out_specs=pl.BlockSpec((N, hps_cols), lambda s: (0, s)),
        ),
        compiler_params=pltpu.CompilerParams(
            dimension_semantics=("parallel",),
            vmem_limit_bytes=_vmem_limit_bytes(),
        ),
    )(x, adj_in, w_slab, a1, a2)

    return out


def gat_block_ref(x, adj, W, a, *, alpha):
    """Pure-JAX reference matching the PyTorch forward (eval mode)."""
    nheads, _, nhid = W.shape
    outs = []
    for h in range(nheads):
        wh = jnp.dot(x, W[h])
        a1 = a[h, :nhid, 0][None, :]
        a2 = a[h, nhid:, 0][None, :]
        f1 = jnp.sum(wh * a1, axis=1, keepdims=True)
        f2 = jnp.sum(wh * a2, axis=1, keepdims=True)
        e = f1 + f2.T
        e = jnp.where(e > 0.0, e, alpha * e)
        e = jnp.where(adj > 0.0, e, -9e15)
        att = jax.nn.softmax(e, axis=1)
        hp = jnp.dot(att, wh)
        outs.append(jax.nn.elu(hp))
    return jnp.concatenate(outs, axis=1)


if __name__ == "__main__":
    # Module config: GAT_block(nfeat, nhid, dropout, alpha, nheads)
    N, nfeat, nhid, nheads = 16, 8, 8, 4
    alpha = 0.2
    dropout = 0.6  # inactive in eval mode

    key = jax.random.PRNGKey(0)
    kx, kadj, kw, ka = jax.random.split(key, 4)

    x = jax.random.normal(kx, (N, nfeat), dtype=jnp.float32)

    # Random binary adjacency with self loops (keeps every softmax row valid).
    adj = (jax.random.uniform(kadj, (N, N)) > 0.5).astype(jnp.float32)
    adj = jnp.maximum(adj, jnp.eye(N, dtype=jnp.float32))

    def xavier_uniform(k, shape, gain):
        fan_in, fan_out = shape[-2], shape[-1]
        limit = gain * (6.0 / (fan_in + fan_out)) ** 0.5
        return jax.random.uniform(k, shape, jnp.float32, -limit, limit)

    # nn.init.xavier_uniform_(..., gain=1.414), stacked over heads.
    W = xavier_uniform(kw, (nheads, nfeat, nhid), 1.414)
    a = xavier_uniform(ka, (nheads, 2 * nhid, 1), 1.414)

    out = gat_block(x, adj, W, a, alpha=alpha, dropout=dropout)
    out = jax.block_until_ready(out)

    ref = gat_block_ref(x, adj, W, a, alpha=alpha)

    assert out.shape == (N, nheads * nhid)
    # Tolerance covers the bf16 second matmul (f32 accumulation), the
    # approximate EUP reciprocal in the deferred softmax normalization, and
    # default-precision f32 MXU matmuls.
    assert jnp.allclose(out, ref, atol=2e-2, rtol=2e-2), "mismatch vs JAX reference"

    print("KERNEL_OK")
</pallas_src>

<mosaic_0001>
module attributes {stable_mosaic.version = 11 : i64} {
  func.func @_gat_block_kernel(%arg0: i32, %arg1: memref<16x8xf32, #tpu.memory_space<vmem>>, %arg2: memref<16x16xbf16, #tpu.memory_space<vmem>>, %arg3: memref<8x32xf32, #tpu.memory_space<vmem>>, %arg4: memref<4x1x8xf32, #tpu.memory_space<vmem>>, %arg5: memref<4x1x8xf32, #tpu.memory_space<vmem>>, %arg6: memref<16x32xf32, #tpu.memory_space<vmem>>) attributes {dimension_semantics = [#tpu.dimension_semantics<parallel>], iteration_bounds = array<i64: 1>, scalar_prefetch = 0 : i64, scratch_operands = 0 : i64, tpu.core_type = #tpu.core_type<tc>, window_params = [{pipeline_mode = #tpu.pipeline_mode<synchronous>, transform_indices = @transform_0, window_bounds = array<i64: 16, 8>}, {pipeline_mode = #tpu.pipeline_mode<synchronous>, transform_indices = @transform_1, window_bounds = array<i64: 16, 16>}, {transform_indices = @transform_2, window_bounds = array<i64: 8, 32>}, {transform_indices = @transform_3, window_bounds = array<i64: 4, 1, 8>}, {transform_indices = @transform_4, window_bounds = array<i64: 4, 1, 8>}, {transform_indices = @transform_5, window_bounds = array<i64: 16, 32>}]} {
    %c0 = arith.constant 0 : index
    %c0_0 = arith.constant 0 : index
    %0 = vector.load %arg1[%c0, %c0_0] : memref<16x8xf32, #tpu.memory_space<vmem>>, vector<16x8xf32>
    %c0_1 = arith.constant 0 : index
    %c0_2 = arith.constant 0 : index
    %1 = vector.load %arg2[%c0_1, %c0_2] : memref<16x16xbf16, #tpu.memory_space<vmem>>, vector<16x16xbf16>
    %cst = arith.constant 0.000000e+00 : bf16
    %2 = vector.broadcast %cst : bf16 to vector<16x16xbf16>
    %3 = arith.cmpf ogt, %1, %2 : vector<16x16xbf16>
    %c0_3 = arith.constant 0 : index
    %c0_4 = arith.constant 0 : index
    %4 = vector.load %arg3[%c0_3, %c0_4] : memref<8x32xf32, #tpu.memory_space<vmem>>, vector<8x32xf32>
    %cst_5 = arith.constant dense<0.000000e+00> : vector<16x32xf32>
    %5 = tpu.matmul %0, %4, %cst_5 {dimension_numbers = #tpu.dot_dimension_numbers<[1], [0], [0], [1], [0, 0, 1, 1], [], []>} : vector<16x8xf32>, vector<8x32xf32>, vector<16x32xf32> -> vector<16x32xf32>
    %cst_6 = arith.constant 1.000000e+00 : bf16
    %6 = vector.broadcast %cst_6 : bf16 to vector<16x1xbf16>
    %7 = vector.extract_strided_slice %5 {offsets = [0, 0], sizes = [16, 8], strides = [1, 1]} : vector<16x32xf32> to vector<16x8xf32>
    %c0_7 = arith.constant 0 : index
    %c0_8 = arith.constant 0 : index
    %c0_9 = arith.constant 0 : index
    %8 = vector.load %arg4[%c0_7, %c0_8, %c0_9] : memref<4x1x8xf32, #tpu.memory_space<vmem>>, vector<1x1x8xf32>
    %9 = vector.shape_cast %8 : vector<1x1x8xf32> to vector<1x8xf32>
    %c0_10 = arith.constant 0 : index
    %c0_11 = arith.constant 0 : index
    %c0_12 = arith.constant 0 : index
    %10 = vector.load %arg5[%c0_10, %c0_11, %c0_12] : memref<4x1x8xf32, #tpu.memory_space<vmem>>, vector<1x1x8xf32>
    %11 = vector.shape_cast %10 : vector<1x1x8xf32> to vector<1x8xf32>
    %12 = vector.broadcast %9 : vector<1x8xf32> to vector<16x8xf32>
    %13 = arith.mulf %7, %12 : vector<16x8xf32>
    %cst_13 = arith.constant dense<0.000000e+00> : vector<16xf32>
    %14 = vector.multi_reduction <add>, %13, %cst_13 [1] : vector<16x8xf32> to vector<16xf32>
    %15 = vector.shape_cast %14 : vector<16xf32> to vector<16x1xf32>
    "tpu.trace_start"() <{level = 10 : i32, message = "hd,nd->hn"}> : () -> ()
    %cst_14 = arith.constant dense<0.000000e+00> : vector<1x16xf32>
    %16 = tpu.matmul %11, %7, %cst_14 {dimension_numbers = #tpu.dot_dimension_numbers<[1], [1], [0], [0], [0, 0, 1, 0], [], []>} : vector<1x8xf32>, vector<16x8xf32>, vector<1x16xf32> -> vector<1x16xf32>
    "tpu.trace_stop"() : () -> ()
    %17 = vector.broadcast %15 : vector<16x1xf32> to vector<16x16xf32>
    %18 = vector.broadcast %16 : vector<1x16xf32> to vector<16x16xf32>
    %19 = arith.addf %17, %18 : vector<16x16xf32>
    %cst_15 = arith.constant 0.000000e+00 : f32
    %20 = vector.broadcast %cst_15 : f32 to vector<16x16xf32>
    %21 = arith.cmpf ogt, %19, %20 : vector<16x16xf32>
    %cst_16 = arith.constant 2.000000e-01 : f32
    %22 = vector.broadcast %cst_16 : f32 to vector<16x16xf32>
    %23 = arith.mulf %22, %19 : vector<16x16xf32>
    %24 = arith.select %21, %19, %23 : vector<16x16xi1>, vector<16x16xf32>
    %cst_17 = arith.constant -9.000000e+15 : f32
    %25 = vector.broadcast %cst_17 : f32 to vector<16x16xf32>
    %26 = arith.select %3, %24, %25 : vector<16x16xi1>, vector<16x16xf32>
    %cst_18 = arith.constant dense<0xFF800000> : vector<16xf32>
    %27 = vector.multi_reduction <maximumf>, %26, %cst_18 [1] : vector<16x16xf32> to vector<16xf32>
    %28 = vector.shape_cast %27 : vector<16xf32> to vector<16x1xf32>
    %29 = vector.broadcast %28 : vector<16x1xf32> to vector<16x16xf32>
    %30 = arith.subf %26, %29 : vector<16x16xf32>
    %31 = math.exp %30 : vector<16x16xf32>
    %32 = arith.truncf %31 : vector<16x16xf32> to vector<16x16xbf16>
    %33 = arith.truncf %7 : vector<16x8xf32> to vector<16x8xbf16>
    %cst_19 = arith.constant dense<0.000000e+00> : vector<16x8xf32>
    %34 = tpu.matmul %32, %33, %cst_19 {dimension_numbers = #tpu.dot_dimension_numbers<[1], [0], [0], [1], [0, 0, 1, 1], [], []>} : vector<16x16xbf16>, vector<16x8xbf16>, vector<16x8xf32> -> vector<16x8xf32>
    %cst_20 = arith.constant dense<0.000000e+00> : vector<16x1xf32>
    %35 = tpu.matmul %32, %6, %cst_20 {dimension_numbers = #tpu.dot_dimension_numbers<[1], [0], [0], [1], [0, 0, 1, 1], [], []>} : vector<16x16xbf16>, vector<16x1xbf16>, vector<16x1xf32> -> vector<16x1xf32>
    %36 = tpu.reciprocal %35 {approx = true} : vector<16x1xf32> -> vector<16x1xf32>
    %37 = vector.broadcast %36 : vector<16x1xf32> to vector<16x8xf32>
    %38 = arith.mulf %34, %37 : vector<16x8xf32>
    %cst_21 = arith.constant 0.000000e+00 : f32
    %39 = vector.broadcast %cst_21 : f32 to vector<16x8xf32>
    %40 = arith.cmpf ogt, %38, %39 : vector<16x8xf32>
    %cst_22 = arith.constant 0.000000e+00 : f32
    %41 = vector.broadcast %cst_22 : f32 to vector<16x8xf32>
    %42 = arith.minimumf %38, %41 : vector<16x8xf32>
    %43 = math.exp %42 : vector<16x8xf32>
    %cst_23 = arith.constant 1.000000e+00 : f32
    %44 = vector.broadcast %cst_23 : f32 to vector<16x8xf32>
    %45 = arith.subf %43, %44 : vector<16x8xf32>
    %46 = arith.select %40, %38, %45 : vector<16x8xi1>, vector<16x8xf32>
    %c0_24 = arith.constant 0 : index
    %c0_25 = arith.constant 0 : index
    %47 = vector.load %arg6[%c0_24, %c0_25] : memref<16x32xf32, #tpu.memory_space<vmem>>, vector<16x8xf32>
    tpu.vector_store %arg6[%c0_24, %c0_25], %46 {strides = array<i32>} : memref<16x32xf32, #tpu.memory_space<vmem>>, vector<16x8xf32>,
    %48 = vector.extract_strided_slice %5 {offsets = [0, 8], sizes = [16, 8], strides = [1, 1]} : vector<16x32xf32> to vector<16x8xf32>
    %c1 = arith.constant 1 : index
    %c0_26 = arith.constant 0 : index
    %c0_27 = arith.constant 0 : index
    %49 = vector.load %arg4[%c1, %c0_26, %c0_27] : memref<4x1x8xf32, #tpu.memory_space<vmem>>, vector<1x1x8xf32>
    %50 = vector.shape_cast %49 : vector<1x1x8xf32> to vector<1x8xf32>
    %c1_28 = arith.constant 1 : index
    %c0_29 = arith.constant 0 : index
    %c0_30 = arith.constant 0 : index
    %51 = vector.load %arg5[%c1_28, %c0_29, %c0_30] : memref<4x1x8xf32, #tpu.memory_space<vmem>>, vector<1x1x8xf32>
    %52 = vector.shape_cast %51 : vector<1x1x8xf32> to vector<1x8xf32>
    %53 = vector.broadcast %50 : vector<1x8xf32> to vector<16x8xf32>
    %54 = arith.mulf %48, %53 : vector<16x8xf32>
    %cst_31 = arith.constant dense<0.000000e+00> : vector<16xf32>
    %55 = vector.multi_reduction <add>, %54, %cst_31 [1] : vector<16x8xf32> to vector<16xf32>
    %56 = vector.shape_cast %55 : vector<16xf32> to vector<16x1xf32>
    "tpu.trace_start"() <{level = 10 : i32, message = "hd,nd->hn"}> : () -> ()
    %cst_32 = arith.constant dense<0.000000e+00> : vector<1x16xf32>
    %57 = tpu.matmul %52, %48, %cst_32 {dimension_numbers = #tpu.dot_dimension_numbers<[1], [1], [0], [0], [0, 0, 1, 0], [], []>} : vector<1x8xf32>, vector<16x8xf32>, vector<1x16xf32> -> vector<1x16xf32>
    "tpu.trace_stop"() : () -> ()
    %58 = vector.broadcast %56 : vector<16x1xf32> to vector<16x16xf32>
    %59 = vector.broadcast %57 : vector<1x16xf32> to vector<16x16xf32>
    %60 = arith.addf %58, %59 : vector<16x16xf32>
    %cst_33 = arith.constant 0.000000e+00 : f32
    %61 = vector.broadcast %cst_33 : f32 to vector<16x16xf32>
    %62 = arith.cmpf ogt, %60, %61 : vector<16x16xf32>
    %cst_34 = arith.constant 2.000000e-01 : f32
    %63 = vector.broadcast %cst_34 : f32 to vector<16x16xf32>
    %64 = arith.mulf %63, %60 : vector<16x16xf32>
    %65 = arith.select %62, %60, %64 : vector<16x16xi1>, vector<16x16xf32>
    %cst_35 = arith.constant -9.000000e+15 : f32
    %66 = vector.broadcast %cst_35 : f32 to vector<16x16xf32>
    %67 = arith.select %3, %65, %66 : vector<16x16xi1>, vector<16x16xf32>
    %cst_36 = arith.constant dense<0xFF800000> : vector<16xf32>
    %68 = vector.multi_reduction <maximumf>, %67, %cst_36 [1] : vector<16x16xf32> to vector<16xf32>
    %69 = vector.shape_cast %68 : vector<16xf32> to vector<16x1xf32>
    %70 = vector.broadcast %69 : vector<16x1xf32> to vector<16x16xf32>
    %71 = arith.subf %67, %70 : vector<16x16xf32>
    %72 = math.exp %71 : vector<16x16xf32>
    %73 = arith.truncf %72 : vector<16x16xf32> to vector<16x16xbf16>
    %74 = arith.truncf %48 : vector<16x8xf32> to vector<16x8xbf16>
    %cst_37 = arith.constant dense<0.000000e+00> : vector<16x8xf32>
    %75 = tpu.matmul %73, %74, %cst_37 {dimension_numbers = #tpu.dot_dimension_numbers<[1], [0], [0], [1], [0, 0, 1, 1], [], []>} : vector<16x16xbf16>, vector<16x8xbf16>, vector<16x8xf32> -> vector<16x8xf32>
    %cst_38 = arith.constant dense<0.000000e+00> : vector<16x1xf32>
    %76 = tpu.matmul %73, %6, %cst_38 {dimension_numbers = #tpu.dot_dimension_numbers<[1], [0], [0], [1], [0, 0, 1, 1], [], []>} : vector<16x16xbf16>, vector<16x1xbf16>, vector<16x1xf32> -> vector<16x1xf32>
    %77 = tpu.reciprocal %76 {approx = true} : vector<16x1xf32> -> vector<16x1xf32>
    %78 = vector.broadcast %77 : vector<16x1xf32> to vector<16x8xf32>
    %79 = arith.mulf %75, %78 : vector<16x8xf32>
    %cst_39 = arith.constant 0.000000e+00 : f32
    %80 = vector.broadcast %cst_39 : f32 to vector<16x8xf32>
    %81 = arith.cmpf ogt, %79, %80 : vector<16x8xf32>
    %cst_40 = arith.constant 0.000000e+00 : f32
    %82 = vector.broadcast %cst_40 : f32 to vector<16x8xf32>
    %83 = arith.minimumf %79, %82 : vector<16x8xf32>
    %84 = math.exp %83 : vector<16x8xf32>
    %cst_41 = arith.constant 1.000000e+00 : f32
    %85 = vector.broadcast %cst_41 : f32 to vector<16x8xf32>
    %86 = arith.subf %84, %85 : vector<16x8xf32>
    %87 = arith.select %81, %79, %86 : vector<16x8xi1>, vector<16x8xf32>
    %c0_42 = arith.constant 0 : index
    %c8 = arith.constant 8 : index
    %88 = vector.load %arg6[%c0_42, %c8] : memref<16x32xf32, #tpu.memory_space<vmem>>, vector<16x8xf32>
    tpu.vector_store %arg6[%c0_42, %c8], %87 {strides = array<i32>} : memref<16x32xf32, #tpu.memory_space<vmem>>, vector<16x8xf32>,
    %89 = vector.extract_strided_slice %5 {offsets = [0, 16], sizes = [16, 8], strides = [1, 1]} : vector<16x32xf32> to vector<16x8xf32>
    %c2 = arith.constant 2 : index
    %c0_43 = arith.constant 0 : index
    %c0_44 = arith.constant 0 : index
    %90 = vector.load %arg4[%c2, %c0_43, %c0_44] : memref<4x1x8xf32, #tpu.memory_space<vmem>>, vector<1x1x8xf32>
    %91 = vector.shape_cast %90 : vector<1x1x8xf32> to vector<1x8xf32>
    %c2_45 = arith.constant 2 : index
    %c0_46 = arith.constant 0 : index
    %c0_47 = arith.constant 0 : index
    %92 = vector.load %arg5[%c2_45, %c0_46, %c0_47] : memref<4x1x8xf32, #tpu.memory_space<vmem>>, vector<1x1x8xf32>
    %93 = vector.shape_cast %92 : vector<1x1x8xf32> to vector<1x8xf32>
    %94 = vector.broadcast %91 : vector<1x8xf32> to vector<16x8xf32>
    %95 = arith.mulf %89, %94 : vector<16x8xf32>
    %cst_48 = arith.constant dense<0.000000e+00> : vector<16xf32>
    %96 = vector.multi_reduction <add>, %95, %cst_48 [1] : vector<16x8xf32> to vector<16xf32>
    %97 = vector.shape_cast %96 : vector<16xf32> to vector<16x1xf32>
    "tpu.trace_start"() <{level = 10 : i32, message = "hd,nd->hn"}> : () -> ()
    %cst_49 = arith.constant dense<0.000000e+00> : vector<1x16xf32>
    %98 = tpu.matmul %93, %89, %cst_49 {dimension_numbers = #tpu.dot_dimension_numbers<[1], [1], [0], [0], [0, 0, 1, 0], [], []>} : vector<1x8xf32>, vector<16x8xf32>, vector<1x16xf32> -> vector<1x16xf32>
    "tpu.trace_stop"() : () -> ()
    %99 = vector.broadcast %97 : vector<16x1xf32> to vector<16x16xf32>
    %100 = vector.broadcast %98 : vector<1x16xf32> to vector<16x16xf32>
    %101 = arith.addf %99, %100 : vector<16x16xf32>
    %cst_50 = arith.constant 0.000000e+00 : f32
    %102 = vector.broadcast %cst_50 : f32 to vector<16x16xf32>
    %103 = arith.cmpf ogt, %101, %102 : vector<16x16xf32>
    %cst_51 = arith.constant 2.000000e-01 : f32
    %104 = vector.broadcast %cst_51 : f32 to vector<16x16xf32>
    %105 = arith.mulf %104, %101 : vector<16x16xf32>
    %106 = arith.select %103, %101, %105 : vector<16x16xi1>, vector<16x16xf32>
    %cst_52 = arith.constant -9.000000e+15 : f32
    %107 = vector.broadcast %cst_52 : f32 to vector<16x16xf32>
    %108 = arith.select %3, %106, %107 : vector<16x16xi1>, vector<16x16xf32>
    %cst_53 = arith.constant dense<0xFF800000> : vector<16xf32>
    %109 = vector.multi_reduction <maximumf>, %108, %cst_53 [1] : vector<16x16xf32> to vector<16xf32>
    %110 = vector.shape_cast %109 : vector<16xf32> to vector<16x1xf32>
    %111 = vector.broadcast %110 : vector<16x1xf32> to vector<16x16xf32>
    %112 = arith.subf %108, %111 : vector<16x16xf32>
    %113 = math.exp %112 : vector<16x16xf32>
    %114 = arith.truncf %113 : vector<16x16xf32> to vector<16x16xbf16>
    %115 = arith.truncf %89 : vector<16x8xf32> to vector<16x8xbf16>
    %cst_54 = arith.constant dense<0.000000e+00> : vector<16x8xf32>
    %116 = tpu.matmul %114, %115, %cst_54 {dimension_numbers = #tpu.dot_dimension_numbers<[1], [0], [0], [1], [0, 0, 1, 1], [], []>} : vector<16x16xbf16>, vector<16x8xbf16>, vector<16x8xf32> -> vector<16x8xf32>
    %cst_55 = arith.constant dense<0.000000e+00> : vector<16x1xf32>
    %117 = tpu.matmul %114, %6, %cst_55 {dimension_numbers = #tpu.dot_dimension_numbers<[1], [0], [0], [1], [0, 0, 1, 1], [], []>} : vector<16x16xbf16>, vector<16x1xbf16>, vector<16x1xf32> -> vector<16x1xf32>
    %118 = tpu.reciprocal %117 {approx = true} : vector<16x1xf32> -> vector<16x1xf32>
    %119 = vector.broadcast %118 : vector<16x1xf32> to vector<16x8xf32>
    %120 = arith.mulf %116, %119 : vector<16x8xf32>
    %cst_56 = arith.constant 0.000000e+00 : f32
    %121 = vector.broadcast %cst_56 : f32 to vector<16x8xf32>
    %122 = arith.cmpf ogt, %120, %121 : vector<16x8xf32>
    %cst_57 = arith.constant 0.000000e+00 : f32
    %123 = vector.broadcast %cst_57 : f32 to vector<16x8xf32>
    %124 = arith.minimumf %120, %123 : vector<16x8xf32>
    %125 = math.exp %124 : vector<16x8xf32>
    %cst_58 = arith.constant 1.000000e+00 : f32
    %126 = vector.broadcast %cst_58 : f32 to vector<16x8xf32>
    %127 = arith.subf %125, %126 : vector<16x8xf32>
    %128 = arith.select %122, %120, %127 : vector<16x8xi1>, vector<16x8xf32>
    %c0_59 = arith.constant 0 : index
    %c16 = arith.constant 16 : index
    %129 = vector.load %arg6[%c0_59, %c16] : memref<16x32xf32, #tpu.memory_space<vmem>>, vector<16x8xf32>
    tpu.vector_store %arg6[%c0_59, %c16], %128 {strides = array<i32>} : memref<16x32xf32, #tpu.memory_space<vmem>>, vector<16x8xf32>,
    %130 = vector.extract_strided_slice %5 {offsets = [0, 24], sizes = [16, 8], strides = [1, 1]} : vector<16x32xf32> to vector<16x8xf32>
    %c3 = arith.constant 3 : index
    %c0_60 = arith.constant 0 : index
    %c0_61 = arith.constant 0 : index
    %131 = vector.load %arg4[%c3, %c0_60, %c0_61] : memref<4x1x8xf32, #tpu.memory_space<vmem>>, vector<1x1x8xf32>
    %132 = vector.shape_cast %131 : vector<1x1x8xf32> to vector<1x8xf32>
    %c3_62 = arith.constant 3 : index
    %c0_63 = arith.constant 0 : index
    %c0_64 = arith.constant 0 : index
    %133 = vector.load %arg5[%c3_62, %c0_63, %c0_64] : memref<4x1x8xf32, #tpu.memory_space<vmem>>, vector<1x1x8xf32>
    %134 = vector.shape_cast %133 : vector<1x1x8xf32> to vector<1x8xf32>
    %135 = vector.broadcast %132 : vector<1x8xf32> to vector<16x8xf32>
    %136 = arith.mulf %130, %135 : vector<16x8xf32>
    %cst_65 = arith.constant dense<0.000000e+00> : vector<16xf32>
    %137 = vector.multi_reduction <add>, %136, %cst_65 [1] : vector<16x8xf32> to vector<16xf32>
    %138 = vector.shape_cast %137 : vector<16xf32> to vector<16x1xf32>
    "tpu.trace_start"() <{level = 10 : i32, message = "hd,nd->hn"}> : () -> ()
    %cst_66 = arith.constant dense<0.000000e+00> : vector<1x16xf32>
    %139 = tpu.matmul %134, %130, %cst_66 {dimension_numbers = #tpu.dot_dimension_numbers<[1], [1], [0], [0], [0, 0, 1, 0], [], []>} : vector<1x8xf32>, vector<16x8xf32>, vector<1x16xf32> -> vector<1x16xf32>
    "tpu.trace_stop"() : () -> ()
    %140 = vector.broadcast %138 : vector<16x1xf32> to vector<16x16xf32>
    %141 = vector.broadcast %139 : vector<1x16xf32> to vector<16x16xf32>
    %142 = arith.addf %140, %141 : vector<16x16xf32>
    %cst_67 = arith.constant 0.000000e+00 : f32
    %143 = vector.broadcast %cst_67 : f32 to vector<16x16xf32>
    %144 = arith.cmpf ogt, %142, %143 : vector<16x16xf32>
    %cst_68 = arith.constant 2.000000e-01 : f32
    %145 = vector.broadcast %cst_68 : f32 to vector<16x16xf32>
    %146 = arith.mulf %145, %142 : vector<16x16xf32>
    %147 = arith.select %144, %142, %146 : vector<16x16xi1>, vector<16x16xf32>
    %cst_69 = arith.constant -9.000000e+15 : f32
    %148 = vector.broadcast %cst_69 : f32 to vector<16x16xf32>
    %149 = arith.select %3, %147, %148 : vector<16x16xi1>, vector<16x16xf32>
    %cst_70 = arith.constant dense<0xFF800000> : vector<16xf32>
    %150 = vector.multi_reduction <maximumf>, %149, %cst_70 [1] : vector<16x16xf32> to vector<16xf32>
    %151 = vector.shape_cast %150 : vector<16xf32> to vector<16x1xf32>
    %152 = vector.broadcast %151 : vector<16x1xf32> to vector<16x16xf32>
    %153 = arith.subf %149, %152 : vector<16x16xf32>
    %154 = math.exp %153 : vector<16x16xf32>
    %155 = arith.truncf %154 : vector<16x16xf32> to vector<16x16xbf16>
    %156 = arith.truncf %130 : vector<16x8xf32> to vector<16x8xbf16>
    %cst_71 = arith.constant dense<0.000000e+00> : vector<16x8xf32>
    %157 = tpu.matmul %155, %156, %cst_71 {dimension_numbers = #tpu.dot_dimension_numbers<[1], [0], [0], [1], [0, 0, 1, 1], [], []>} : vector<16x16xbf16>, vector<16x8xbf16>, vector<16x8xf32> -> vector<16x8xf32>
    %cst_72 = arith.constant dense<0.000000e+00> : vector<16x1xf32>
    %158 = tpu.matmul %155, %6, %cst_72 {dimension_numbers = #tpu.dot_dimension_numbers<[1], [0], [0], [1], [0, 0, 1, 1], [], []>} : vector<16x16xbf16>, vector<16x1xbf16>, vector<16x1xf32> -> vector<16x1xf32>
    %159 = tpu.reciprocal %158 {approx = true} : vector<16x1xf32> -> vector<16x1xf32>
    %160 = vector.broadcast %159 : vector<16x1xf32> to vector<16x8xf32>
    %161 = arith.mulf %157, %160 : vector<16x8xf32>
    %cst_73 = arith.constant 0.000000e+00 : f32
    %162 = vector.broadcast %cst_73 : f32 to vector<16x8xf32>
    %163 = arith.cmpf ogt, %161, %162 : vector<16x8xf32>
    %cst_74 = arith.constant 0.000000e+00 : f32
    %164 = vector.broadcast %cst_74 : f32 to vector<16x8xf32>
    %165 = arith.minimumf %161, %164 : vector<16x8xf32>
    %166 = math.exp %165 : vector<16x8xf32>
    %cst_75 = arith.constant 1.000000e+00 : f32
    %167 = vector.broadcast %cst_75 : f32 to vector<16x8xf32>
    %168 = arith.subf %166, %167 : vector<16x8xf32>
    %169 = arith.select %163, %161, %168 : vector<16x8xi1>, vector<16x8xf32>
    %c0_76 = arith.constant 0 : index
    %c24 = arith.constant 24 : index
    %170 = vector.load %arg6[%c0_76, %c24] : memref<16x32xf32, #tpu.memory_space<vmem>>, vector<16x8xf32>
    tpu.vector_store %arg6[%c0_76, %c24], %169 {strides = array<i32>} : memref<16x32xf32, #tpu.memory_space<vmem>>, vector<16x8xf32>,
    return
  }
  func.func @transform_0(%arg0: i32) -> (i32, i32) {
    %c0_i32 = arith.constant 0 : i32
    %c0_i32_0 = arith.constant 0 : i32
    %c0_i32_1 = arith.constant 0 : i32
    return %c0_i32, %c0_i32_0 : i32, i32
  }
  func.func @transform_1(%arg0: i32) -> (i32, i32) {
    %c0_i32 = arith.constant 0 : i32
    %c0_i32_0 = arith.constant 0 : i32
    %c0_i32_1 = arith.constant 0 : i32
    return %c0_i32, %c0_i32_0 : i32, i32
  }
  func.func @transform_2(%arg0: i32) -> (i32, i32) {
    %c0_i32 = arith.constant 0 : i32
    %c0_i32_0 = arith.constant 0 : i32
    return %c0_i32, %arg0 : i32, i32
  }
  func.func @transform_3(%arg0: i32) -> (i32, i32, i32) {
    %c0_i32 = arith.constant 0 : i32
    %c0_i32_0 = arith.constant 0 : i32
    %c0_i32_1 = arith.constant 0 : i32
    return %arg0, %c0_i32, %c0_i32_0 : i32, i32, i32
  }
  func.func @transform_4(%arg0: i32) -> (i32, i32, i32) {
    %c0_i32 = arith.constant 0 : i32
    %c0_i32_0 = arith.constant 0 : i32
    %c0_i32_1 = arith.constant 0 : i32
    return %arg0, %c0_i32, %c0_i32_0 : i32, i32, i32
  }
  func.func @transform_5(%arg0: i32) -> (i32, i32) {
    %c0_i32 = arith.constant 0 : i32
    %c0_i32_0 = arith.constant 0 : i32
    return %c0_i32, %arg0 : i32, i32
  }
}

</mosaic_0001>

<llo_original>
// kernel: tpu_custom_call.1
$region0: #{tpu_custom_call.1}
  #allocation0 [shape = 'u32[]', space=smem, size = 0x4, offset = 0x4, fixed_abs, tag = 'smem constant byte address 0x4 - core index']
  #allocation1 [shape = 'u32[144,128]{1,0:T(1,128)}', space=vmem, size = 0x12000, scoped, tag = 'internal scratch']
  %s0 = inlined_call_operand.vmem [shape: f32[16,8], index: 0, kind: input, shape index: {}]
  %s1 = inlined_call_operand.vmem [shape: bf16[16,16], index: 1, kind: input, shape index: {}]
  %s2 = inlined_call_operand.vmem [shape: f32[8,32], index: 2, kind: input, shape index: {}]
  %s3 = inlined_call_operand.vmem [shape: f32[4,1,8], index: 3, kind: input, shape index: {}]
  %s4 = inlined_call_operand.vmem [shape: f32[4,1,8], index: 4, kind: input, shape index: {}]
  %s5 = inlined_call_operand.hbm [shape: f32[16,32], index: 5, kind: output, shape index: {}]
  %s6 = sld [smem:[#allocation0]]
  $region30: #{tpu_custom_call.1} parent=0
    _
  %s8 = ssub.s32 1, %s6
  %s9 = scalar_select 0, %s8, %s6
  $region1: #{tpu_custom_call.1} parent=0
    #allocation2 [shape = 'u8[8192]{0}', space=vmem, size = 0x2000, scoped, tag = 'output window, operand 0, single buffered']
    #allocation3 [shape = 's32[1]{0}', space=sflag, size = 0x4, scoped, tag = 'scoped memory for tpu_custom_call.1']
    %10 = vsyncpa [#allocation3], 0
    // Predicated region
    $region2: #{tpu_custom_call.1} parent=1 // pred_check
      _
    $region3: #{tpu_custom_call.1} parent=1 // pred_check_branch
      %12 = sbr.rel (0) target = $region5
    $region4: #{tpu_custom_call.1} parent=1 // pred_region
      _
    $region5: #{tpu_custom_call.1} parent=1 // pred_fallthru
      _
    // Predicated region
    $region6: #{tpu_custom_call.1} parent=1 // pred_check
      _
    $region7: #{tpu_custom_call.1} parent=1 // pred_check_branch
      %14 = sbr.rel (0) target = $region9
    $region8: #{tpu_custom_call.1} parent=1 // pred_region
      _
    $region9: #{tpu_custom_call.1} parent=1 // pred_fallthru
      _
    // Predicated region
    $region10: #{tpu_custom_call.1} parent=1 // pred_check
      _
    $region11: #{tpu_custom_call.1} parent=1 // pred_check_branch
      %16 = sbr.rel (0) target = $region13
    $region12: #{tpu_custom_call.1} parent=1 // pred_region
      _
    $region13: #{tpu_custom_call.1} parent=1 // pred_fallthru
      _
    // Predicated region
    $region14: #{tpu_custom_call.1} parent=1 // pred_check
      _
    $region15: #{tpu_custom_call.1} parent=1 // pred_check_branch
      %18 = sbr.rel (0) target = $region17
    $region16: #{tpu_custom_call.1} parent=1 // pred_region
      _
    $region17: #{tpu_custom_call.1} parent=1 // pred_fallthru
      _
    // Predicated region
    $region18: #{tpu_custom_call.1} parent=1 // pred_check
      _
    $region19: #{tpu_custom_call.1} parent=1 // pred_check_branch
      %20 = sbr.rel (0) target = $region21
    $region20: #{tpu_custom_call.1} parent=1 // pred_region
      _
    $region21: #{tpu_custom_call.1} parent=1 // pred_fallthru
      _
    %v25 = vld [vmem:[%s0] sm:$0xff]
    %v26 = vld [vmem:[%s0 + $0x8] sm:$0xff]
    %v27 = vld [vmem:[%s1] sm:$0xf]
    %v28 = vld [vmem:[%s1 + $0x4] sm:$0xf]
    %vm29 = vcmp.gt.bf16.partialorder %v27, 0
    %vm30 = vcmp.gt.bf16.partialorder %v28, 0
    %v31 = vld [vmem:[%s2] sm:$0xff]
    %vm32 = vcmask 64512
    %v34 = vsel %vm32, %v25, 0
    %v37 = vsel %vm32, %v26, 0
    %39 = vmatprep.subr.mxu0 0.0
    %40 = vmatpush1.msra.mxu0 %v31
    %41 = vmatprep.subr.mxu0 0.0
    %42 = vmatpush1.msra.mxu0 0.0
    %43 = vmatprep.subr.mxu0 0.0
    %44 = vmatpush1.msra.mxu0 0.0
    %45 = vmatprep.subr.mxu0 0.0
    %46 = vmatpush1.msra.mxu0 0.0
    %47 = vmatprep.subr.mxu0 0.0
    %48 = vmatpush1.msra.mxu0 0.0
    %49 = vmatprep.subr.mxu0 0.0
    %50 = vmatpush1.msra.mxu0 0.0
    %51 = vmatprep.subr.mxu0 0.0
    %52 = vmatpush1.msra.mxu0 0.0
    %53 = vmatprep.subr.mxu0 0.0
    %54 = vmatpush1.msra.mxu0 0.0
    %55 = vmatprep.subr.mxu0 0.0
    %56 = vmatpush1.msra.mxu0 0.0
    %57 = vmatprep.subr.mxu0 0.0
    %58 = vmatpush1.msra.mxu0 0.0
    %59 = vmatprep.subr.mxu0 0.0
    %60 = vmatpush1.msra.mxu0 0.0
    %61 = vmatprep.subr.mxu0 0.0
    %62 = vmatpush1.msra.mxu0 0.0
    %63 = vmatprep.subr.mxu0 0.0
    %64 = vmatpush1.msra.mxu0 0.0
    %65 = vmatprep.subr.mxu0 0.0
    %66 = vmatpush1.msra.mxu0 0.0
    %67 = vmatprep.subr.mxu0 0.0
    %68 = vmatpush1.msra.mxu0 0.0
    %69 = vmatprep.subr.mxu0 0.0
    %70 = vmatpush1.msra.mxu0 0.0
    %71 = vmatprep.subr.mxu0 0.0
    %72 = vmatpush1.msra.mxu0 0.0
    %73 = vmatprep.subr.mxu0 0.0
    %74 = vmatpush1.msra.mxu0 0.0
    %75 = vmatprep.subr.mxu0 0.0
    %76 = vmatpush1.msra.mxu0 0.0
    %77 = vmatprep.subr.mxu0 0.0
    %78 = vmatpush1.msra.mxu0 0.0
    %79 = vmatprep.subr.mxu0 0.0
    %80 = vmatpush1.msra.mxu0 0.0
    %81 = vmatprep.subr.mxu0 0.0
    %82 = vmatpush1.msra.mxu0 0.0
    %83 = vmatprep.subr.mxu0 0.0
    %84 = vmatpush1.msra.mxu0 0.0
    %85 = vmatprep.subr.mxu0 0.0
    %86 = vmatpush1.msra.mxu0 0.0
    %87 = vmatprep.subr.mxu0 0.0
    %88 = vmatpush1.msra.mxu0 0.0
    %89 = vmatprep.subr.mxu0 0.0
    %90 = vmatpush1.msra.mxu0 0.0
    %91 = vmatprep.subr.mxu0 0.0
    %92 = vmatpush1.msra.mxu0 0.0
    %93 = vmatprep.subr.mxu0 0.0
    %94 = vmatpush1.msra.mxu0 0.0
    %95 = vmatprep.subr.mxu0 0.0
    %96 = vmatpush1.msra.mxu0 0.0
    %97 = vmatprep.subr.mxu0 0.0
    %98 = vmatpush1.msra.mxu0 0.0
    %99 = vmatprep.subr.mxu0 0.0
    %100 = vmatpush1.msra.mxu0 0.0
    %101 = vmatprep.subr.mxu0 0.0
    %102 = vmatpush1.msra.mxu0 0.0
    %103 = vmatprep.mubr.f32.mxu0 0.0
    %104 = vmatmul.mubr.f32.gmra.mrb[0].mxu0 %v34
    %v105 = vpop.f32.mrb[0].mxu0
    %v106 = vadd.f32 0.0, %v105
    %v107 = vpop.f32.mrb[0].mxu0
    %108 = vmatprep.mubr.f32.mxu0 0.0
    %109 = vmatmul.mubr.f32.gmra.mrb[0].mxu0 %v37
    %v110 = vpop.f32.mrb[0].mxu0
    %v111 = vadd.f32 0.0, %v110
    %v112 = vpop.f32.mrb[0].mxu0
    %113 = vdwg.mxu0
    %v114 = vld [vmem:[%s3] sm:$0x1]
    %v115 = vld [vmem:[%s4] sm:$0x1]
    %v117 = vlaneseq
    %v118 = vshrl.u32 %v117, 7
    %v119 = vsub.s32 0, %v118
    %v120 = vrot.slane %v114, %v119
    %v122 = vmul.f32 %v106, %v120
    %v123 = vmul.f32 %v111, %v120
    %v124 = vsel %vm32, %v122, 0.0
    %125 = vadd.xlane.f32.xlu0 %v124
    %v126 = vpop.xlane.xlu0 %125
    %v127 = vsel %vm32, %v123, 0.0
    %128 = vadd.xlane.f32.xlu0 %v127
    %v129 = vpop.xlane.xlu0 %128
    %v131 = vsel %vm32, %v115, 0
    %v134 = vsel %vm32, %v106, 0
    %v137 = vsel %vm32, %v111, 0
    %139 = vmatprep.subr.mxu0 0.0
    %140 = vmatpush1.xpose.msra.mxu0 %v134
    %141 = vmatprep.subr.mxu0 0.0
    %142 = vmatpush1.xpose.msra.mxu0 %v137
    %143 = vmatprep.subr.mxu0 0.0
    %144 = vmatpush1.xpose.msra.mxu0 0.0
    %145 = vmatprep.subr.mxu0 0.0
    %146 = vmatpush1.xpose.msra.mxu0 0.0
    %147 = vmatprep.subr.mxu0 0.0
    %148 = vmatpush1.xpose.msra.mxu0 0.0
    %149 = vmatprep.subr.mxu0 0.0
    %150 = vmatpush1.xpose.msra.mxu0 0.0
    %151 = vmatprep.subr.mxu0 0.0
    %152 = vmatpush1.xpose.msra.mxu0 0.0
    %153 = vmatprep.subr.mxu0 0.0
    %154 = vmatpush1.xpose.msra.mxu0 0.0
    %155 = vmatprep.subr.mxu0 0.0
    %156 = vmatpush1.xpose.msra.mxu0 0.0
    %157 = vmatprep.subr.mxu0 0.0
    %158 = vmatpush1.xpose.msra.mxu0 0.0
    %159 = vmatprep.subr.mxu0 0.0
    %160 = vmatpush1.xpose.msra.mxu0 0.0
    %161 = vmatprep.subr.mxu0 0.0
    %162 = vmatpush1.xpose.msra.mxu0 0.0
    %163 = vmatprep.subr.mxu0 0.0
    %164 = vmatpush1.xpose.msra.mxu0 0.0
    %165 = vmatprep.subr.mxu0 0.0
    %166 = vmatpush1.xpose.msra.mxu0 0.0
    %167 = vmatprep.subr.mxu0 0.0
    %168 = vmatpush1.xpose.msra.mxu0 0.0
    %169 = vmatprep.subr.mxu0 0.0
    %170 = vmatpush1.xpose.msra.mxu0 0.0
    %171 = vmatprep.subr.mxu0 0.0
    %172 = vmatpush1.xpose.msra.mxu0 0.0
    %173 = vmatprep.subr.mxu0 0.0
    %174 = vmatpush1.xpose.msra.mxu0 0.0
    %175 = vmatprep.subr.mxu0 0.0
    %176 = vmatpush1.xpose.msra.mxu0 0.0
    %177 = vmatprep.subr.mxu0 0.0
    %178 = vmatpush1.xpose.msra.mxu0 0.0
    %179 = vmatprep.subr.mxu0 0.0
    %180 = vmatpush1.xpose.msra.mxu0 0.0
    %181 = vmatprep.subr.mxu0 0.0
    %182 = vmatpush1.xpose.msra.mxu0 0.0
    %183 = vmatprep.subr.mxu0 0.0
    %184 = vmatpush1.xpose.msra.mxu0 0.0
    %185 = vmatprep.subr.mxu0 0.0
    %186 = vmatpush1.xpose.msra.mxu0 0.0
    %187 = vmatprep.subr.mxu0 0.0
    %188 = vmatpush1.xpose.msra.mxu0 0.0
    %189 = vmatprep.subr.mxu0 0.0
    %190 = vmatpush1.xpose.msra.mxu0 0.0
    %191 = vmatprep.subr.mxu0 0.0
    %192 = vmatpush1.xpose.msra.mxu0 0.0
    %193 = vmatprep.subr.mxu0 0.0
    %194 = vmatpush1.xpose.msra.mxu0 0.0
    %195 = vmatprep.subr.mxu0 0.0
    %196 = vmatpush1.xpose.msra.mxu0 0.0
    %197 = vmatprep.subr.mxu0 0.0
    %198 = vmatpush1.xpose.msra.mxu0 0.0
    %199 = vmatprep.subr.mxu0 0.0
    %200 = vmatpush1.xpose.msra.mxu0 0.0
    %201 = vmatprep.subr.mxu0 0.0
    %202 = vmatpush1.xpose.msra.mxu0 0.0
    %203 = vmatprep.mubr.f32.mxu0 0.0
    %204 = vmatmul.mubr.f32.gmra.mrb[0].mxu0 %v131
    %v205 = vpop.f32.mrb[0].mxu0
    %v206 = vadd.f32 0.0, %v205
    %v207 = vpop.f32.mrb[0].mxu0
    %208 = vdwg.mxu0
    %v209 = vlaneseq
    %v210 = vshrl.u32 %v209, 7
    %v211 = vsub.s32 0, %v210
    %v212 = vrot.slane %v206, %v211
    %v213 = vadd.f32 %v126, %v212
    %v214 = vadd.f32 %v129, %v212
    %vm215 = vcmp.gt.f32.partialorder %v213, 0.0
    %vm216 = vcmp.gt.f32.partialorder %v214, 0.0
    %v217 = vmul.f32 %v213, 0.2
    %v218 = vmul.f32 %v214, 0.2
    %v219 = vsel %vm215, %v213, %v217
    %v220 = vsel %vm216, %v214, %v218
    %v221 = vsel %vm29, 65537, 0
    %v222 = vsel %vm30, 65537, 0
    %v223 = vunpack.c.l.b16 %v221
    %v224 = vunpack.c.l.b16 %v222
    %vm225 = vcmp.ne.s32.totalorder %v223, 0
    %vm226 = vcmp.ne.s32.totalorder %v224, 0
    %v227 = vsel %vm225, %v219, -9e+15
    %v228 = vsel %vm226, %v220, -9e+15
    %vm229 = vcmask 130048
    %v230 = vsel %vm229, %v227, -inf
    %231 = vmax.xlane.f32.xlu0 %v230
    %v232 = vpop.xlane.xlu0 %231
    %v233 = vsel %vm229, %v228, -inf
    %234 = vmax.xlane.f32.xlu0 %v233
    %v235 = vpop.xlane.xlu0 %234
    %v236 = vsub.f32 %v227, %v232
    %v237 = vsub.f32 %v228, %v235
    %v238 = vmul.f32 %v236, 1.442695
    %v239 = vpow.pop %v238
    %v240 = vmul.f32 %v237, 1.442695
    %v241 = vpow.pop %v240
    %v242 = vpack.c.bf16 %v241, %v239
    %v243 = vpack.c.bf16 %v111, %v106
    %v245 = vsel %vm229, %v242, 0
    %247 = vmatprep.subr.bf16.mxu0 0
    %248 = vmatpush1.bf16.msra.mxu0 %v243
    %249 = vmatprep.subr.bf16.mxu0 0
    %250 = vmatpush1.bf16.msra.mxu0 0
    %251 = vmatprep.subr.bf16.mxu0 0
    %252 = vmatpush1.bf16.msra.mxu0 0
    %253 = vmatprep.subr.bf16.mxu0 0
    %254 = vmatpush1.bf16.msra.mxu0 0
    %255 = vmatprep.subr.bf16.mxu0 0
    %256 = vmatpush1.bf16.msra.mxu0 0
    %257 = vmatprep.subr.bf16.mxu0 0
    %258 = vmatpush1.bf16.msra.mxu0 0
    %259 = vmatprep.subr.bf16.mxu0 0
    %260 = vmatpush1.bf16.msra.mxu0 0
    %261 = vmatprep.subr.bf16.mxu0 0
    %262 = vmatpush1.bf16.msra.mxu0 0
    %263 = vmatprep.subr.bf16.mxu0 0
    %264 = vmatpush1.bf16.msra.mxu0 0
    %265 = vmatprep.subr.bf16.mxu0 0
    %266 = vmatpush1.bf16.msra.mxu0 0
    %267 = vmatprep.subr.bf16.mxu0 0
    %268 = vmatpush1.bf16.msra.mxu0 0
    %269 = vmatprep.subr.bf16.mxu0 0
    %270 = vmatpush1.bf16.msra.mxu0 0
    %271 = vmatprep.subr.bf16.mxu0 0
    %272 = vmatpush1.bf16.msra.mxu0 0
    %273 = vmatprep.subr.bf16.mxu0 0
    %274 = vmatpush1.bf16.msra.mxu0 0
    %275 = vmatprep.subr.bf16.mxu0 0
    %276 = vmatpush1.bf16.msra.mxu0 0
    %277 = vmatprep.subr.bf16.mxu0 0
    %278 = vmatpush1.bf16.msra.mxu0 0
    %279 = vmatprep.mubr.bf16.mxu0 0
    %280 = vmatmul.mubr.bf16.gmra.mrb[0].mxu0 %v245
    %v281 = vpop.f32.mrb[0].mxu0
    %v282 = vadd.f32 0.0, %v281
    %v283 = vpop.f32.mrb[0].mxu0
    %v284 = vpop.f32.mrb[0].mxu0
    %v285 = vadd.f32 0.0, %v284
    %v286 = vpop.f32.mrb[0].mxu0
    %287 = vdwg.mxu0
    %288 = vmatprep.subr.bf16.mxu0 0
    %289 = vmatpush1.bf16.msra.mxu0 1065369472
    %290 = vmatprep.subr.bf16.mxu0 0
    %291 = vmatpush1.bf16.msra.mxu0 0
    %292 = vmatprep.subr.bf16.mxu0 0
    %293 = vmatpush1.bf16.msra.mxu0 0
    %294 = vmatprep.subr.bf16.mxu0 0
    %295 = vmatpush1.bf16.msra.mxu0 0
    %296 = vmatprep.subr.bf16.mxu0 0
    %297 = vmatpush1.bf16.msra.mxu0 0
    %298 = vmatprep.subr.bf16.mxu0 0
    %299 = vmatpush1.bf16.msra.mxu0 0
    %300 = vmatprep.subr.bf16.mxu0 0
    %301 = vmatpush1.bf16.msra.mxu0 0
    %302 = vmatprep.subr.bf16.mxu0 0
    %303 = vmatpush1.bf16.msra.mxu0 0
    %304 = vmatprep.subr.bf16.mxu0 0
    %305 = vmatpush1.bf16.msra.mxu0 0
    %306 = vmatprep.subr.bf16.mxu0 0
    %307 = vmatpush1.bf16.msra.mxu0 0
    %308 = vmatprep.subr.bf16.mxu0 0
    %309 = vmatpush1.bf16.msra.mxu0 0
    %310 = vmatprep.subr.bf16.mxu0 0
    %311 = vmatpush1.bf16.msra.mxu0 0
    %312 = vmatprep.subr.bf16.mxu0 0
    %313 = vmatpush1.bf16.msra.mxu0 0
    %314 = vmatprep.subr.bf16.mxu0 0
    %315 = vmatpush1.bf16.msra.mxu0 0
    %316 = vmatprep.subr.bf16.mxu0 0
    %317 = vmatpush1.bf16.msra.mxu0 0
    %318 = vmatprep.subr.bf16.mxu0 0
    %319 = vmatpush1.bf16.msra.mxu0 0
    %320 = vmatprep.mubr.bf16.mxu0 0
    %321 = vmatmul.mubr.bf16.gmra.mrb[0].mxu0 %v245
    %v322 = vpop.f32.mrb[0].mxu0
    %v323 = vadd.f32 0.0, %v322
    %v324 = vpop.f32.mrb[0].mxu0
    %v325 = vpop.f32.mrb[0].mxu0
    %v326 = vadd.f32 0.0, %v325
    %v327 = vpop.f32.mrb[0].mxu0
    %328 = vdwg.mxu0
    %v329 = vrcp.pop %v323
    %v330 = vrcp.pop %v326
    %332 = vset.pattern.permute.xlu0 0
    %333 = vperm.xlu0 %332, %v329
    %v334 = vpop.permute.xlu0 %333
    %337 = vset.pattern.permute.xlu0 0
    %338 = vperm.xlu0 %337, %v330
    %v339 = vpop.permute.xlu0 %338
    %v341 = vmul.f32 %v282, %v334
    %v342 = vmul.f32 %v285, %v339
    %vm343 = vcmp.gt.f32.partialorder %v341, 0.0
    %vm344 = vcmp.gt.f32.partialorder %v342, 0.0
    %v345 = vmin.f32 %v341, 0.0
    %v346 = vmin.f32 %v342, 0.0
    %v347 = vmul.f32 %v345, 1.442695
    %v348 = vpow.pop %v347
    %v349 = vmul.f32 %v346, 1.442695
    %v350 = vpow.pop %v349
    %v351 = vsub.f32 %v348, 1.0
    %v352 = vsub.f32 %v350, 1.0
    %v353 = vsel %vm343, %v341, %v351
    %v354 = vsel %vm344, %v342, %v352
    %355 = vst.msk [vmem:[#allocation2] sm:$0xff] %vm32, %v353
    %356 = vst.msk [vmem:[#allocation2 + $0x8] sm:$0xff] %vm32, %v354
    %s357 = scalar_lea.vmem %s3, 1
    %v358 = vld [vmem:[%s357] sm:$0x1]
    %s359 = scalar_lea.vmem %s4, 1
    %v360 = vld [vmem:[%s359] sm:$0x1]
    %v362 = vlaneseq
    %v363 = vshrl.u32 %v362, 7
    %v364 = vsub.s32 0, %v363
    %v365 = vrot.slane %v358, %v364
    %366 = vrot.lane.b32.xlu0 %v365, 8
    %v367 = vpop.permute.xlu0 %366
    %v369 = vmul.f32 %v106, %v367
    %v370 = vmul.f32 %v111, %v367
    %373 = vrot.lane.b32.xlu0 %v369, 120
    %v374 = vpop.permute.xlu0 %373
    %375 = vrot.lane.b32.xlu0 %v370, 120
    %v376 = vpop.permute.xlu0 %375
    %v379 = vsel %vm32, %v374, 0.0
    %380 = vadd.xlane.f32.xlu0 %v379
    %v381 = vpop.xlane.xlu0 %380
    %v382 = vsel %vm32, %v376, 0.0
    %383 = vadd.xlane.f32.xlu0 %v382
    %v384 = vpop.xlane.xlu0 %383
    %385 = vrot.lane.b32.xlu0 %v106, 120
    %v386 = vpop.permute.xlu0 %385
    %387 = vrot.lane.b32.xlu0 %v111, 120
    %v388 = vpop.permute.xlu0 %387
    %v390 = vsel %vm32, %v360, 0
    %v392 = vsel %vm32, %v386, 0
    %v394 = vsel %vm32, %v388, 0
    %396 = vmatprep.subr.mxu0 0.0
    %397 = vmatpush1.xpose.msra.mxu0 %v392
    %398 = vmatprep.subr.mxu0 0.0
    %399 = vmatpush1.xpose.msra.mxu0 %v394
    %400 = vmatprep.subr.mxu0 0.0
    %401 = vmatpush1.xpose.msra.mxu0 0.0
    %402 = vmatprep.subr.mxu0 0.0
    %403 = vmatpush1.xpose.msra.mxu0 0.0
    %404 = vmatprep.subr.mxu0 0.0
    %405 = vmatpush1.xpose.msra.mxu0 0.0
    %406 = vmatprep.subr.mxu0 0.0
    %407 = vmatpush1.xpose.msra.mxu0 0.0
    %408 = vmatprep.subr.mxu0 0.0
    %409 = vmatpush1.xpose.msra.mxu0 0.0
    %410 = vmatprep.subr.mxu0 0.0
    %411 = vmatpush1.xpose.msra.mxu0 0.0
    %412 = vmatprep.subr.mxu0 0.0
    %413 = vmatpush1.xpose.msra.mxu0 0.0
    %414 = vmatprep.subr.mxu0 0.0
    %415 = vmatpush1.xpose.msra.mxu0 0.0
    %416 = vmatprep.subr.mxu0 0.0
    %417 = vmatpush1.xpose.msra.mxu0 0.0
    %418 = vmatprep.subr.mxu0 0.0
    %419 = vmatpush1.xpose.msra.mxu0 0.0
    %420 = vmatprep.subr.mxu0 0.0
    %421 = vmatpush1.xpose.msra.mxu0 0.0
    %422 = vmatprep.subr.mxu0 0.0
    %423 = vmatpush1.xpose.msra.mxu0 0.0
    %424 = vmatprep.subr.mxu0 0.0
    %425 = vmatpush1.xpose.msra.mxu0 0.0
    %426 = vmatprep.subr.mxu0 0.0
    %427 = vmatpush1.xpose.msra.mxu0 0.0
    %428 = vmatprep.subr.mxu0 0.0
    %429 = vmatpush1.xpose.msra.mxu0 0.0
    %430 = vmatprep.subr.mxu0 0.0
    %431 = vmatpush1.xpose.msra.mxu0 0.0
    %432 = vmatprep.subr.mxu0 0.0
    %433 = vmatpush1.xpose.msra.mxu0 0.0
    %434 = vmatprep.subr.mxu0 0.0
    %435 = vmatpush1.xpose.msra.mxu0 0.0
    %436 = vmatprep.subr.mxu0 0.0
    %437 = vmatpush1.xpose.msra.mxu0 0.0
    %438 = vmatprep.subr.mxu0 0.0
    %439 = vmatpush1.xpose.msra.mxu0 0.0
    %440 = vmatprep.subr.mxu0 0.0
    %441 = vmatpush1.xpose.msra.mxu0 0.0
    %442 = vmatprep.subr.mxu0 0.0
    %443 = vmatpush1.xpose.msra.mxu0 0.0
    %444 = vmatprep.subr.mxu0 0.0
    %445 = vmatpush1.xpose.msra.mxu0 0.0
    %446 = vmatprep.subr.mxu0 0.0
    %447 = vmatpush1.xpose.msra.mxu0 0.0
    %448 = vmatprep.subr.mxu0 0.0
    %449 = vmatpush1.xpose.msra.mxu0 0.0
    %450 = vmatprep.subr.mxu0 0.0
    %451 = vmatpush1.xpose.msra.mxu0 0.0
    %452 = vmatprep.subr.mxu0 0.0
    %453 = vmatpush1.xpose.msra.mxu0 0.0
    %454 = vmatprep.subr.mxu0 0.0
    %455 = vmatpush1.xpose.msra.mxu0 0.0
    %456 = vmatprep.subr.mxu0 0.0
    %457 = vmatpush1.xpose.msra.mxu0 0.0
    %458 = vmatprep.subr.mxu0 0.0
    %459 = vmatpush1.xpose.msra.mxu0 0.0
    %460 = vmatprep.mubr.f32.mxu0 0.0
    %461 = vmatmul.mubr.f32.gmra.mrb[0].mxu0 %v390
    %v462 = vpop.f32.mrb[0].mxu0
    %v463 = vadd.f32 0.0, %v462
    %v464 = vpop.f32.mrb[0].mxu0
    %465 = vdwg.mxu0
    %v466 = vlaneseq
    %v467 = vshrl.u32 %v466, 7
    %v468 = vsub.s32 0, %v467
    %v469 = vrot.slane %v463, %v468
    %v470 = vadd.f32 %v381, %v469
    %v471 = vadd.f32 %v384, %v469
    %vm472 = vcmp.gt.f32.partialorder %v470, 0.0
    %vm473 = vcmp.gt.f32.partialorder %v471, 0.0
    %v474 = vmul.f32 %v470, 0.2
    %v475 = vmul.f32 %v471, 0.2
    %v476 = vsel %vm472, %v470, %v474
    %v477 = vsel %vm473, %v471, %v475
    %v478 = vsel %vm225, %v476, -9e+15
    %v479 = vsel %vm226, %v477, -9e+15
    %v480 = vsel %vm229, %v478, -inf
    %481 = vmax.xlane.f32.xlu0 %v480
    %v482 = vpop.xlane.xlu0 %481
    %v483 = vsel %vm229, %v479, -inf
    %484 = vmax.xlane.f32.xlu0 %v483
    %v485 = vpop.xlane.xlu0 %484
    %v486 = vsub.f32 %v478, %v482
    %v487 = vsub.f32 %v479, %v485
    %v488 = vmul.f32 %v486, 1.442695
    %v489 = vpow.pop %v488
    %v490 = vmul.f32 %v487, 1.442695
    %v491 = vpow.pop %v490
    %v492 = vpack.c.bf16 %v491, %v489
    %494 = vrot.lane.b32.xlu0 %v243, 120
    %v495 = vpop.permute.xlu0 %494
    %v498 = vsel %vm229, %v492, 0
    %500 = vmatprep.subr.bf16.mxu0 0
    %501 = vmatpush1.bf16.msra.mxu0 %v495
    %502 = vmatprep.subr.bf16.mxu0 0
    %503 = vmatpush1.bf16.msra.mxu0 0
    %504 = vmatprep.subr.bf16.mxu0 0
    %505 = vmatpush1.bf16.msra.mxu0 0
    %506 = vmatprep.subr.bf16.mxu0 0
    %507 = vmatpush1.bf16.msra.mxu0 0
    %508 = vmatprep.subr.bf16.mxu0 0
    %509 = vmatpush1.bf16.msra.mxu0 0
    %510 = vmatprep.subr.bf16.mxu0 0
    %511 = vmatpush1.bf16.msra.mxu0 0
    %512 = vmatprep.subr.bf16.mxu0 0
    %513 = vmatpush1.bf16.msra.mxu0 0
    %514 = vmatprep.subr.bf16.mxu0 0
    %515 = vmatpush1.bf16.msra.mxu0 0
    %516 = vmatprep.subr.bf16.mxu0 0
    %517 = vmatpush1.bf16.msra.mxu0 0
    %518 = vmatprep.subr.bf16.mxu0 0
    %519 = vmatpush1.bf16.msra.mxu0 0
    %520 = vmatprep.subr.bf16.mxu0 0
    %521 = vmatpush1.bf16.msra.mxu0 0
    %522 = vmatprep.subr.bf16.mxu0 0
    %523 = vmatpush1.bf16.msra.mxu0 0
    %524 = vmatprep.subr.bf16.mxu0 0
    %525 = vmatpush1.bf16.msra.mxu0 0
    %526 = vmatprep.subr.bf16.mxu0 0
    %527 = vmatpush1.bf16.msra.mxu0 0
    %528 = vmatprep.subr.bf16.mxu0 0
    %529 = vmatpush1.bf16.msra.mxu0 0
    %530 = vmatprep.subr.bf16.mxu0 0
    %531 = vmatpush1.bf16.msra.mxu0 0
    %532 = vmatprep.mubr.bf16.mxu0 0
    %533 = vmatmul.mubr.bf16.gmra.mrb[0].mxu0 %v498
    %v534 = vpop.f32.mrb[0].mxu0
    %v535 = vadd.f32 0.0, %v534
    %v536 = vpop.f32.mrb[0].mxu0
    %v537 = vpop.f32.mrb[0].mxu0
    %v538 = vadd.f32 0.0, %v537
    %v539 = vpop.f32.mrb[0].mxu0
    %540 = vdwg.mxu0
    %541 = vmatprep.subr.bf16.mxu0 0
    %542 = vmatpush1.bf16.msra.mxu0 1065369472
    %543 = vmatprep.subr.bf16.mxu0 0
    %544 = vmatpush1.bf16.msra.mxu0 0
    %545 = vmatprep.subr.bf16.mxu0 0
    %546 = vmatpush1.bf16.msra.mxu0 0
    %547 = vmatprep.subr.bf16.mxu0 0
    %548 = vmatpush1.bf16.msra.mxu0 0
    %549 = vmatprep.subr.bf16.mxu0 0
    %550 = vmatpush1.bf16.msra.mxu0 0
    %551 = vmatprep.subr.bf16.mxu0 0
    %552 = vmatpush1.bf16.msra.mxu0 0
    %553 = vmatprep.subr.bf16.mxu0 0
    %554 = vmatpush1.bf16.msra.mxu0 0
    %555 = vmatprep.subr.bf16.mxu0 0
    %556 = vmatpush1.bf16.msra.mxu0 0
    %557 = vmatprep.subr.bf16.mxu0 0
    %558 = vmatpush1.bf16.msra.mxu0 0
    %559 = vmatprep.subr.bf16.mxu0 0
    %560 = vmatpush1.bf16.msra.mxu0 0
    %561 = vmatprep.subr.bf16.mxu0 0
    %562 = vmatpush1.bf16.msra.mxu0 0
    %563 = vmatprep.subr.bf16.mxu0 0
    %564 = vmatpush1.bf16.msra.mxu0 0
    %565 = vmatprep.subr.bf16.mxu0 0
    %566 = vmatpush1.bf16.msra.mxu0 0
    %567 = vmatprep.subr.bf16.mxu0 0
    %568 = vmatpush1.bf16.msra.mxu0 0
    %569 = vmatprep.subr.bf16.mxu0 0
    %570 = vmatpush1.bf16.msra.mxu0 0
    %571 = vmatprep.subr.bf16.mxu0 0
    %572 = vmatpush1.bf16.msra.mxu0 0
    %573 = vmatprep.mubr.bf16.mxu0 0
    %574 = vmatmul.mubr.bf16.gmra.mrb[0].mxu0 %v498
    %v575 = vpop.f32.mrb[0].mxu0
    %v576 = vadd.f32 0.0, %v575
    %v577 = vpop.f32.mrb[0].mxu0
    %v578 = vpop.f32.mrb[0].mxu0
    %v579 = vadd.f32 0.0, %v578
    %v580 = vpop.f32.mrb[0].mxu0
    %581 = vdwg.mxu0
    %v582 = vrcp.pop %v576
    %v583 = vrcp.pop %v579
    %585 = vset.pattern.permute.xlu0 0
    %586 = vperm.xlu0 %585, %v582
    %v587 = vpop.permute.xlu0 %586
    %590 = vset.pattern.permute.xlu0 0
    %591 = vperm.xlu0 %590, %v583
    %v592 = vpop.permute.xlu0 %591
    %v594 = vmul.f32 %v535, %v587
    %v595 = vmul.f32 %v538, %v592
    %vm596 = vcmp.gt.f32.partialorder %v594, 0.0
    %vm597 = vcmp.gt.f32.partialorder %v595, 0.0
    %v598 = vmin.f32 %v594, 0.0
    %v599 = vmin.f32 %v595, 0.0
    %v600 = vmul.f32 %v598, 1.442695
    %v601 = vpow.pop %v600
    %v602 = vmul.f32 %v599, 1.442695
    %v603 = vpow.pop %v602
    %v604 = vsub.f32 %v601, 1.0
    %v605 = vsub.f32 %v603, 1.0
    %v606 = vsel %vm596, %v594, %v604
    %v607 = vsel %vm597, %v595, %v605
    %610 = vrot.lane.b32.xlu0 %v606, 8
    %v611 = vpop.permute.xlu0 %610
    %612 = vrot.lane.b32.xlu0 %v607, 8
    %v613 = vpop.permute.xlu0 %612
    %vm616 = vcmask 130112
    %617 = vst.msk [vmem:[#allocation2] sm:$0xff] %vm616, %v611
    %618 = vst.msk [vmem:[#allocation2 + $0x8] sm:$0xff] %vm616, %v613
    %s619 = scalar_lea.vmem %s3, 2
    %v620 = vld [vmem:[%s619] sm:$0x1]
    %s621 = scalar_lea.vmem %s4, 2
    %v622 = vld [vmem:[%s621] sm:$0x1]
    %v624 = vlaneseq
    %v625 = vshrl.u32 %v624, 7
    %v626 = vsub.s32 0, %v625
    %v627 = vrot.slane %v620, %v626
    %628 = vrot.lane.b32.xlu0 %v627, 16
    %v629 = vpop.permute.xlu0 %628
    %v631 = vmul.f32 %v106, %v629
    %v632 = vmul.f32 %v111, %v629
    %635 = vrot.lane.b32.xlu0 %v631, 112
    %v636 = vpop.permute.xlu0 %635
    %637 = vrot.lane.b32.xlu0 %v632, 112
    %v638 = vpop.permute.xlu0 %637
    %v641 = vsel %vm32, %v636, 0.0
    %642 = vadd.xlane.f32.xlu0 %v641
    %v643 = vpop.xlane.xlu0 %642
    %v644 = vsel %vm32, %v638, 0.0
    %645 = vadd.xlane.f32.xlu0 %v644
    %v646 = vpop.xlane.xlu0 %645
    %647 = vrot.lane.b32.xlu0 %v106, 112
    %v648 = vpop.permute.xlu0 %647
    %649 = vrot.lane.b32.xlu0 %v111, 112
    %v650 = vpop.permute.xlu0 %649
    %v652 = vsel %vm32, %v622, 0
    %v654 = vsel %vm32, %v648, 0
    %v656 = vsel %vm32, %v650, 0
    %658 = vmatprep.subr.mxu0 0.0
    %659 = vmatpush1.xpose.msra.mxu0 %v654
    %660 = vmatprep.subr.mxu0 0.0
    %661 = vmatpush1.xpose.msra.mxu0 %v656
    %662 = vmatprep.subr.mxu0 0.0
    %663 = vmatpush1.xpose.msra.mxu0 0.0
    %664 = vmatprep.subr.mxu0 0.0
    %665 = vmatpush1.xpose.msra.mxu0 0.0
    %666 = vmatprep.subr.mxu0 0.0
    %667 = vmatpush1.xpose.msra.mxu0 0.0
    %668 = vmatprep.subr.mxu0 0.0
    %669 = vmatpush1.xpose.msra.mxu0 0.0
    %670 = vmatprep.subr.mxu0 0.0
    %671 = vmatpush1.xpose.msra.mxu0 0.0
    %672 = vmatprep.subr.mxu0 0.0
    %673 = vmatpush1.xpose.msra.mxu0 0.0
    %674 = vmatprep.subr.mxu0 0.0
    %675 = vmatpush1.xpose.msra.mxu0 0.0
    %676 = vmatprep.subr.mxu0 0.0
    %677 = vmatpush1.xpose.msra.mxu0 0.0
    %678 = vmatprep.subr.mxu0 0.0
    %679 = vmatpush1.xpose.msra.mxu0 0.0
    %680 = vmatprep.subr.mxu0 0.0
    %681 = vmatpush1.xpose.msra.mxu0 0.0
    %682 = vmatprep.subr.mxu0 0.0
    %683 = vmatpush1.xpose.msra.mxu0 0.0
    %684 = vmatprep.subr.mxu0 0.0
    %685 = vmatpush1.xpose.msra.mxu0 0.0
    %686 = vmatprep.subr.mxu0 0.0
    %687 = vmatpush1.xpose.msra.mxu0 0.0
    %688 = vmatprep.subr.mxu0 0.0
    %689 = vmatpush1.xpose.msra.mxu0 0.0
    %690 = vmatprep.subr.mxu0 0.0
    %691 = vmatpush1.xpose.msra.mxu0 0.0
    %692 = vmatprep.subr.mxu0 0.0
    %693 = vmatpush1.xpose.msra.mxu0 0.0
    %694 = vmatprep.subr.mxu0 0.0
    %695 = vmatpush1.xpose.msra.mxu0 0.0
    %696 = vmatprep.subr.mxu0 0.0
    %697 = vmatpush1.xpose.msra.mxu0 0.0
    %698 = vmatprep.subr.mxu0 0.0
    %699 = vmatpush1.xpose.msra.mxu0 0.0
    %700 = vmatprep.subr.mxu0 0.0
    %701 = vmatpush1.xpose.msra.mxu0 0.0
    %702 = vmatprep.subr.mxu0 0.0
    %703 = vmatpush1.xpose.msra.mxu0 0.0
    %704 = vmatprep.subr.mxu0 0.0
    %705 = vmatpush1.xpose.msra.mxu0 0.0
    %706 = vmatprep.subr.mxu0 0.0
    %707 = vmatpush1.xpose.msra.mxu0 0.0
    %708 = vmatprep.subr.mxu0 0.0
    %709 = vmatpush1.xpose.msra.mxu0 0.0
    %710 = vmatprep.subr.mxu0 0.0
    %711 = vmatpush1.xpose.msra.mxu0 0.0
    %712 = vmatprep.subr.mxu0 0.0
    %713 = vmatpush1.xpose.msra.mxu0 0.0
    %714 = vmatprep.subr.mxu0 0.0
    %715 = vmatpush1.xpose.msra.mxu0 0.0
    %716 = vmatprep.subr.mxu0 0.0
    %717 = vmatpush1.xpose.msra.mxu0 0.0
    %718 = vmatprep.subr.mxu0 0.0
    %719 = vmatpush1.xpose.msra.mxu0 0.0
    %720 = vmatprep.subr.mxu0 0.0
    %721 = vmatpush1.xpose.msra.mxu0 0.0
    %722 = vmatprep.mubr.f32.mxu0 0.0
    %723 = vmatmul.mubr.f32.gmra.mrb[0].mxu0 %v652
    %v724 = vpop.f32.mrb[0].mxu0
    %v725 = vadd.f32 0.0, %v724
    %v726 = vpop.f32.mrb[0].mxu0
    %727 = vdwg.mxu0
    %v728 = vlaneseq
    %v729 = vshrl.u32 %v728, 7
    %v730 = vsub.s32 0, %v729
    %v731 = vrot.slane %v725, %v730
    %v732 = vadd.f32 %v643, %v731
    %v733 = vadd.f32 %v646, %v731
    %vm734 = vcmp.gt.f32.partialorder %v732, 0.0
    %vm735 = vcmp.gt.f32.partialorder %v733, 0.0
    %v736 = vmul.f32 %v732, 0.2
    %v737 = vmul.f32 %v733, 0.2
    %v738 = vsel %vm734, %v732, %v736
    %v739 = vsel %vm735, %v733, %v737
    %v740 = vsel %vm225, %v738, -9e+15
    %v741 = vsel %vm226, %v739, -9e+15
    %v742 = vsel %vm229, %v740, -inf
    %743 = vmax.xlane.f32.xlu0 %v742
    %v744 = vpop.xlane.xlu0 %743
    %v745 = vsel %vm229, %v741, -inf
    %746 = vmax.xlane.f32.xlu0 %v745
    %v747 = vpop.xlane.xlu0 %746
    %v748 = vsub.f32 %v740, %v744
    %v749 = vsub.f32 %v741, %v747
    %v750 = vmul.f32 %v748, 1.442695
    %v751 = vpow.pop %v750
    %v752 = vmul.f32 %v749, 1.442695
    %v753 = vpow.pop %v752
    %v754 = vpack.c.bf16 %v753, %v751
    %755 = vrot.lane.b32.xlu0 %v243, 112
    %v756 = vpop.permute.xlu0 %755
    %v759 = vsel %vm229, %v754, 0
    %761 = vmatprep.subr.bf16.mxu0 0
    %762 = vmatpush1.bf16.msra.mxu0 %v756
    %763 = vmatprep.subr.bf16.mxu0 0
    %764 = vmatpush1.bf16.msra.mxu0 0
    %765 = vmatprep.subr.bf16.mxu0 0
    %766 = vmatpush1.bf16.msra.mxu0 0
    %767 = vmatprep.subr.bf16.mxu0 0
    %768 = vmatpush1.bf16.msra.mxu0 0
    %769 = vmatprep.subr.bf16.mxu0 0
    %770 = vmatpush1.bf16.msra.mxu0 0
    %771 = vmatprep.subr.bf16.mxu0 0
    %772 = vmatpush1.bf16.msra.mxu0 0
    %773 = vmatprep.subr.bf16.mxu0 0
    %774 = vmatpush1.bf16.msra.mxu0 0
    %775 = vmatprep.subr.bf16.mxu0 0
    %776 = vmatpush1.bf16.msra.mxu0 0
    %777 = vmatprep.subr.bf16.mxu0 0
    %778 = vmatpush1.bf16.msra.mxu0 0
    %779 = vmatprep.subr.bf16.mxu0 0
    %780 = vmatpush1.bf16.msra.mxu0 0
    %781 = vmatprep.subr.bf16.mxu0 0
    %782 = vmatpush1.bf16.msra.mxu0 0
    %783 = vmatprep.subr.bf16.mxu0 0
    %784 = vmatpush1.bf16.msra.mxu0 0
    %785 = vmatprep.subr.bf16.mxu0 0
    %786 = vmatpush1.bf16.msra.mxu0 0
    %787 = vmatprep.subr.bf16.mxu0 0
    %788 = vmatpush1.bf16.msra.mxu0 0
    %789 = vmatprep.subr.bf16.mxu0 0
    %790 = vmatpush1.bf16.msra.mxu0 0
    %791 = vmatprep.subr.bf16.mxu0 0
    %792 = vmatpush1.bf16.msra.mxu0 0
    %793 = vmatprep.mubr.bf16.mxu0 0
    %794 = vmatmul.mubr.bf16.gmra.mrb[0].mxu0 %v759
    %v795 = vpop.f32.mrb[0].mxu0
    %v796 = vadd.f32 0.0, %v795
    %v797 = vpop.f32.mrb[0].mxu0
    %v798 = vpop.f32.mrb[0].mxu0
    %v799 = vadd.f32 0.0, %v798
    %v800 = vpop.f32.mrb[0].mxu0
    %801 = vdwg.mxu0
    %802 = vmatprep.subr.bf16.mxu0 0
    %803 = vmatpush1.bf16.msra.mxu0 1065369472
    %804 = vmatprep.subr.bf16.mxu0 0
    %805 = vmatpush1.bf16.msra.mxu0 0
    %806 = vmatprep.subr.bf16.mxu0 0
    %807 = vmatpush1.bf16.msra.mxu0 0
    %808 = vmatprep.subr.bf16.mxu0 0
    %809 = vmatpush1.bf16.msra.mxu0 0
    %810 = vmatprep.subr.bf16.mxu0 0
    %811 = vmatpush1.bf16.msra.mxu0 0
    %812 = vmatprep.subr.bf16.mxu0 0
    %813 = vmatpush1.bf16.msra.mxu0 0
    %814 = vmatprep.subr.bf16.mxu0 0
    %815 = vmatpush1.bf16.msra.mxu0 0
    %816 = vmatprep.subr.bf16.mxu0 0
    %817 = vmatpush1.bf16.msra.mxu0 0
    %818 = vmatprep.subr.bf16.mxu0 0
    %819 = vmatpush1.bf16.msra.mxu0 0
    %820 = vmatprep.subr.bf16.mxu0 0
    %821 = vmatpush1.bf16.msra.mxu0 0
    %822 = vmatprep.subr.bf16.mxu0 0
    %823 = vmatpush1.bf16.msra.mxu0 0
    %824 = vmatprep.subr.bf16.mxu0 0
    %825 = vmatpush1.bf16.msra.mxu0 0
    %826 = vmatprep.subr.bf16.mxu0 0
    %827 = vmatpush1.bf16.msra.mxu0 0
    %828 = vmatprep.subr.bf16.mxu0 0
    %829 = vmatpush1.bf16.msra.mxu0 0
    %830 = vmatprep.subr.bf16.mxu0 0
    %831 = vmatpush1.bf16.msra.mxu0 0
    %832 = vmatprep.subr.bf16.mxu0 0
    %833 = vmatpush1.bf16.msra.mxu0 0
    %834 = vmatprep.mubr.bf16.mxu0 0
    %835 = vmatmul.mubr.bf16.gmra.mrb[0].mxu0 %v759
    %v836 = vpop.f32.mrb[0].mxu0
    %v837 = vadd.f32 0.0, %v836
    %v838 = vpop.f32.mrb[0].mxu0
    %v839 = vpop.f32.mrb[0].mxu0
    %v840 = vadd.f32 0.0, %v839
    %v841 = vpop.f32.mrb[0].mxu0
    %842 = vdwg.mxu0
    %v843 = vrcp.pop %v837
    %v844 = vrcp.pop %v840
    %846 = vset.pattern.permute.xlu0 0
    %847 = vperm.xlu0 %846, %v843
    %v848 = vpop.permute.xlu0 %847
    %851 = vset.pattern.permute.xlu0 0
    %852 = vperm.xlu0 %851, %v844
    %v853 = vpop.permute.xlu0 %852
    %v855 = vmul.f32 %v796, %v848
    %v856 = vmul.f32 %v799, %v853
    %vm857 = vcmp.gt.f32.partialorder %v855, 0.0
    %vm858 = vcmp.gt.f32.partialorder %v856, 0.0
    %v859 = vmin.f32 %v855, 0.0
    %v860 = vmin.f32 %v856, 0.0
    %v861 = vmul.f32 %v859, 1.442695
    %v862 = vpow.pop %v861
    %v863 = vmul.f32 %v860, 1.442695
    %v864 = vpow.pop %v863
    %v865 = vsub.f32 %v862, 1.0
    %v866 = vsub.f32 %v864, 1.0
    %v867 = vsel %vm857, %v855, %v865
    %v868 = vsel %vm858, %v856, %v866
    %871 = vrot.lane.b32.xlu0 %v867, 16
    %v872 = vpop.permute.xlu0 %871
    %873 = vrot.lane.b32.xlu0 %v868, 16
    %v874 = vpop.permute.xlu0 %873
    %vm877 = vcmask 195712
    %878 = vst.msk [vmem:[#allocation2] sm:$0xff] %vm877, %v872
    %879 = vst.msk [vmem:[#allocation2 + $0x8] sm:$0xff] %vm877, %v874
    %s880 = scalar_lea.vmem %s3, 3
    %v881 = vld [vmem:[%s880] sm:$0x1]
    %s882 = scalar_lea.vmem %s4, 3
    %v883 = vld [vmem:[%s882] sm:$0x1]
    %v885 = vlaneseq
    %v886 = vshrl.u32 %v885, 7
    %v887 = vsub.s32 0, %v886
    %v888 = vrot.slane %v881, %v887
    %889 = vrot.lane.b32.xlu0 %v888, 24
    %v890 = vpop.permute.xlu0 %889
    %v892 = vmul.f32 %v106, %v890
    %v893 = vmul.f32 %v111, %v890
    %896 = vrot.lane.b32.xlu0 %v892, 104
    %v897 = vpop.permute.xlu0 %896
    %898 = vrot.lane.b32.xlu0 %v893, 104
    %v899 = vpop.permute.xlu0 %898
    %v902 = vsel %vm32, %v897, 0.0
    %903 = vadd.xlane.f32.xlu0 %v902
    %v904 = vpop.xlane.xlu0 %903
    %v905 = vsel %vm32, %v899, 0.0
    %906 = vadd.xlane.f32.xlu0 %v905
    %v907 = vpop.xlane.xlu0 %906
    %908 = vrot.lane.b32.xlu0 %v106, 104
    %v909 = vpop.permute.xlu0 %908
    %910 = vrot.lane.b32.xlu0 %v111, 104
    %v911 = vpop.permute.xlu0 %910
    %v913 = vsel %vm32, %v883, 0
    %v915 = vsel %vm32, %v909, 0
    %v917 = vsel %vm32, %v911, 0
    %919 = vmatprep.subr.mxu0 0.0
    %920 = vmatpush1.xpose.msra.mxu0 %v915
    %921 = vmatprep.subr.mxu0 0.0
    %922 = vmatpush1.xpose.msra.mxu0 %v917
    %923 = vmatprep.subr.mxu0 0.0
    %924 = vmatpush1.xpose.msra.mxu0 0.0
    %925 = vmatprep.subr.mxu0 0.0
    %926 = vmatpush1.xpose.msra.mxu0 0.0
    %927 = vmatprep.subr.mxu0 0.0
    %928 = vmatpush1.xpose.msra.mxu0 0.0
    %929 = vmatprep.subr.mxu0 0.0
    %930 = vmatpush1.xpose.msra.mxu0 0.0
    %931 = vmatprep.subr.mxu0 0.0
    %932 = vmatpush1.xpose.msra.mxu0 0.0
    %933 = vmatprep.subr.mxu0 0.0
    %934 = vmatpush1.xpose.msra.mxu0 0.0
    %935 = vmatprep.subr.mxu0 0.0
    %936 = vmatpush1.xpose.msra.mxu0 0.0
    %937 = vmatprep.subr.mxu0 0.0
    %938 = vmatpush1.xpose.msra.mxu0 0.0
    %939 = vmatprep.subr.mxu0 0.0
    %940 = vmatpush1.xpose.msra.mxu0 0.0
    %941 = vmatprep.subr.mxu0 0.0
    %942 = vmatpush1.xpose.msra.mxu0 0.0
    %943 = vmatprep.subr.mxu0 0.0
    %944 = vmatpush1.xpose.msra.mxu0 0.0
    %945 = vmatprep.subr.mxu0 0.0
    %946 = vmatpush1.xpose.msra.mxu0 0.0
    %947 = vmatprep.subr.mxu0 0.0
    %948 = vmatpush1.xpose.msra.mxu0 0.0
    %949 = vmatprep.subr.mxu0 0.0
    %950 = vmatpush1.xpose.msra.mxu0 0.0
    %951 = vmatprep.subr.mxu0 0.0
    %952 = vmatpush1.xpose.msra.mxu0 0.0
    %953 = vmatprep.subr.mxu0 0.0
    %954 = vmatpush1.xpose.msra.mxu0 0.0
    %955 = vmatprep.subr.mxu0 0.0
    %956 = vmatpush1.xpose.msra.mxu0 0.0
    %957 = vmatprep.subr.mxu0 0.0
    %958 = vmatpush1.xpose.msra.mxu0 0.0
    %959 = vmatprep.subr.mxu0 0.0
    %960 = vmatpush1.xpose.msra.mxu0 0.0
    %961 = vmatprep.subr.mxu0 0.0
    %962 = vmatpush1.xpose.msra.mxu0 0.0
    %963 = vmatprep.subr.mxu0 0.0
    %964 = vmatpush1.xpose.msra.mxu0 0.0
    %965 = vmatprep.subr.mxu0 0.0
    %966 = vmatpush1.xpose.msra.mxu0 0.0
    %967 = vmatprep.subr.mxu0 0.0
    %968 = vmatpush1.xpose.msra.mxu0 0.0
    %969 = vmatprep.subr.mxu0 0.0
    %970 = vmatpush1.xpose.msra.mxu0 0.0
    %971 = vmatprep.subr.mxu0 0.0
    %972 = vmatpush1.xpose.msra.mxu0 0.0
    %973 = vmatprep.subr.mxu0 0.0
    %974 = vmatpush1.xpose.msra.mxu0 0.0
    %975 = vmatprep.subr.mxu0 0.0
    %976 = vmatpush1.xpose.msra.mxu0 0.0
    %977 = vmatprep.subr.mxu0 0.0
    %978 = vmatpush1.xpose.msra.mxu0 0.0
    %979 = vmatprep.subr.mxu0 0.0
    %980 = vmatpush1.xpose.msra.mxu0 0.0
    %981 = vmatprep.subr.mxu0 0.0
    %982 = vmatpush1.xpose.msra.mxu0 0.0
    %983 = vmatprep.mubr.f32.mxu0 0.0
    %984 = vmatmul.mubr.f32.gmra.mrb[0].mxu0 %v913
    %v985 = vpop.f32.mrb[0].mxu0
    %v986 = vadd.f32 0.0, %v985
    %v987 = vpop.f32.mrb[0].mxu0
    %988 = vdwg.mxu0
    %v989 = vlaneseq
    %v990 = vshrl.u32 %v989, 7
    %v991 = vsub.s32 0, %v990
    %v992 = vrot.slane %v986, %v991
    %v993 = vadd.f32 %v904, %v992
    %v994 = vadd.f32 %v907, %v992
    %vm995 = vcmp.gt.f32.partialorder %v993, 0.0
    %vm996 = vcmp.gt.f32.partialorder %v994, 0.0
    %v997 = vmul.f32 %v993, 0.2
    %v998 = vmul.f32 %v994, 0.2
    %v999 = vsel %vm995, %v993, %v997
    %v1000 = vsel %vm996, %v994, %v998
    %v1001 = vsel %vm225, %v999, -9e+15
    %v1002 = vsel %vm226, %v1000, -9e+15
    %v1003 = vsel %vm229, %v1001, -inf
    %1004 = vmax.xlane.f32.xlu0 %v1003
    %v1005 = vpop.xlane.xlu0 %1004
    %v1006 = vsel %vm229, %v1002, -inf
    %1007 = vmax.xlane.f32.xlu0 %v1006
    %v1008 = vpop.xlane.xlu0 %1007
    %v1009 = vsub.f32 %v1001, %v1005
    %v1010 = vsub.f32 %v1002, %v1008
    %v1011 = vmul.f32 %v1009, 1.442695
    %v1012 = vpow.pop %v1011
    %v1013 = vmul.f32 %v1010, 1.442695
    %v1014 = vpow.pop %v1013
    %v1015 = vpack.c.bf16 %v1014, %v1012
    %1016 = vrot.lane.b32.xlu0 %v243, 104
    %v1017 = vpop.permute.xlu0 %1016
    %v1020 = vsel %vm229, %v1015, 0
    %1022 = vmatprep.subr.bf16.mxu0 0
    %1023 = vmatpush1.bf16.msra.mxu0 %v1017
    %1024 = vmatprep.subr.bf16.mxu0 0
    %1025 = vmatpush1.bf16.msra.mxu0 0
    %1026 = vmatprep.subr.bf16.mxu0 0
    %1027 = vmatpush1.bf16.msra.mxu0 0
    %1028 = vmatprep.subr.bf16.mxu0 0
    %1029 = vmatpush1.bf16.msra.mxu0 0
    %1030 = vmatprep.subr.bf16.mxu0 0
    %1031 = vmatpush1.bf16.msra.mxu0 0
    %1032 = vmatprep.subr.bf16.mxu0 0
    %1033 = vmatpush1.bf16.msra.mxu0 0
    %1034 = vmatprep.subr.bf16.mxu0 0
    %1035 = vmatpush1.bf16.msra.mxu0 0
    %1036 = vmatprep.subr.bf16.mxu0 0
    %1037 = vmatpush1.bf16.msra.mxu0 0
    %1038 = vmatprep.subr.bf16.mxu0 0
    %1039 = vmatpush1.bf16.msra.mxu0 0
    %1040 = vmatprep.subr.bf16.mxu0 0
    %1041 = vmatpush1.bf16.msra.mxu0 0
    %1042 = vmatprep.subr.bf16.mxu0 0
    %1043 = vmatpush1.bf16.msra.mxu0 0
    %1044 = vmatprep.subr.bf16.mxu0 0
    %1045 = vmatpush1.bf16.msra.mxu0 0
    %1046 = vmatprep.subr.bf16.mxu0 0
    %1047 = vmatpush1.bf16.msra.mxu0 0
    %1048 = vmatprep.subr.bf16.mxu0 0
    %1049 = vmatpush1.bf16.msra.mxu0 0
    %1050 = vmatprep.subr.bf16.mxu0 0
    %1051 = vmatpush1.bf16.msra.mxu0 0
    %1052 = vmatprep.subr.bf16.mxu0 0
    %1053 = vmatpush1.bf16.msra.mxu0 0
    %1054 = vmatprep.mubr.bf16.mxu0 0
    %1055 = vmatmul.mubr.bf16.gmra.mrb[0].mxu0 %v1020
    %v1056 = vpop.f32.mrb[0].mxu0
    %v1057 = vadd.f32 0.0, %v1056
    %v1058 = vpop.f32.mrb[0].mxu0
    %v1059 = vpop.f32.mrb[0].mxu0
    %v1060 = vadd.f32 0.0, %v1059
    %v1061 = vpop.f32.mrb[0].mxu0
    %1062 = vdwg.mxu0
    %1063 = vmatprep.subr.bf16.mxu0 0
    %1064 = vmatpush1.bf16.msra.mxu0 1065369472
    %1065 = vmatprep.subr.bf16.mxu0 0
    %1066 = vmatpush1.bf16.msra.mxu0 0
    %1067 = vmatprep.subr.bf16.mxu0 0
    %1068 = vmatpush1.bf16.msra.mxu0 0
    %1069 = vmatprep.subr.bf16.mxu0 0
    %1070 = vmatpush1.bf16.msra.mxu0 0
    %1071 = vmatprep.subr.bf16.mxu0 0
    %1072 = vmatpush1.bf16.msra.mxu0 0
    %1073 = vmatprep.subr.bf16.mxu0 0
    %1074 = vmatpush1.bf16.msra.mxu0 0
    %1075 = vmatprep.subr.bf16.mxu0 0
    %1076 = vmatpush1.bf16.msra.mxu0 0
    %1077 = vmatprep.subr.bf16.mxu0 0
    %1078 = vmatpush1.bf16.msra.mxu0 0
    %1079 = vmatprep.subr.bf16.mxu0 0
    %1080 = vmatpush1.bf16.msra.mxu0 0
    %1081 = vmatprep.subr.bf16.mxu0 0
    %1082 = vmatpush1.bf16.msra.mxu0 0
    %1083 = vmatprep.subr.bf16.mxu0 0
    %1084 = vmatpush1.bf16.msra.mxu0 0
    %1085 = vmatprep.subr.bf16.mxu0 0
    %1086 = vmatpush1.bf16.msra.mxu0 0
    %1087 = vmatprep.subr.bf16.mxu0 0
    %1088 = vmatpush1.bf16.msra.mxu0 0
    %1089 = vmatprep.subr.bf16.mxu0 0
    %1090 = vmatpush1.bf16.msra.mxu0 0
    %1091 = vmatprep.subr.bf16.mxu0 0
    %1092 = vmatpush1.bf16.msra.mxu0 0
    %1093 = vmatprep.subr.bf16.mxu0 0
    %1094 = vmatpush1.bf16.msra.mxu0 0
    %1095 = vmatprep.mubr.bf16.mxu0 0
    %1096 = vmatmul.mubr.bf16.gmra.mrb[0].mxu0 %v1020
    %v1097 = vpop.f32.mrb[0].mxu0
    %v1098 = vadd.f32 0.0, %v1097
    %v1099 = vpop.f32.mrb[0].mxu0
    %v1100 = vpop.f32.mrb[0].mxu0
    %v1101 = vadd.f32 0.0, %v1100
    %v1102 = vpop.f32.mrb[0].mxu0
    %1103 = vdwg.mxu0
    %v1104 = vrcp.pop %v1098
    %v1105 = vrcp.pop %v1101
    %1107 = vset.pattern.permute.xlu0 0
    %1108 = vperm.xlu0 %1107, %v1104
    %v1109 = vpop.permute.xlu0 %1108
    %1112 = vset.pattern.permute.xlu0 0
    %1113 = vperm.xlu0 %1112, %v1105
    %v1114 = vpop.permute.xlu0 %1113
    %v1116 = vmul.f32 %v1057, %v1109
    %v1117 = vmul.f32 %v1060, %v1114
    %vm1118 = vcmp.gt.f32.partialorder %v1116, 0.0
    %vm1119 = vcmp.gt.f32.partialorder %v1117, 0.0
    %v1120 = vmin.f32 %v1116, 0.0
    %v1121 = vmin.f32 %v1117, 0.0
    %v1122 = vmul.f32 %v1120, 1.442695
    %v1123 = vpow.pop %v1122
    %v1124 = vmul.f32 %v1121, 1.442695
    %v1125 = vpow.pop %v1124
    %v1126 = vsub.f32 %v1123, 1.0
    %v1127 = vsub.f32 %v1125, 1.0
    %v1128 = vsel %vm1118, %v1116, %v1126
    %v1129 = vsel %vm1119, %v1117, %v1127
    %1132 = vrot.lane.b32.xlu0 %v1128, 24
    %v1133 = vpop.permute.xlu0 %1132
    %1134 = vrot.lane.b32.xlu0 %v1129, 24
    %v1135 = vpop.permute.xlu0 %1134
    %vm1138 = vcmask 261312
    %1139 = vst.msk [vmem:[#allocation2] sm:$0xff] %vm1138, %v1133
    %1140 = vst.msk [vmem:[#allocation2 + $0x8] sm:$0xff] %vm1138, %v1135
    // Predicated region
    $region22: #{tpu_custom_call.1} parent=1 // pred_check
      _
    $region23: #{tpu_custom_call.1} parent=1 // pred_check_branch
      %1142 = sbr.rel (0) target = $region25
    $region24: #{tpu_custom_call.1} parent=1 // pred_region
      %s1144 = ssub.s32 256, 256
      %1145 = vsyncadd [#allocation3], %s1144
      %s1146 = sshll.u32 [#allocation2], 4
      %s1147 = int_to_ptr.vmem [resolvable:$true] %s1146
      %1152 = dma.vmem_to_hbm [thread:$0]  %s1147, 256, %s5, [#allocation3], 128, 128, 8
    $region25: #{tpu_custom_call.1} parent=1 // pred_fallthru
      _
    // Predicated region
    $region26: #{tpu_custom_call.1} parent=1 // pred_check
      _
    $region27: #{tpu_custom_call.1} parent=1 // pred_check_branch
      %1154 = sbr.rel (0) target = $region29
    $region28: #{tpu_custom_call.1} parent=1 // pred_region
      %1155 = dma.done [#allocation3], 256
    $region29: #{tpu_custom_call.1} parent=1 // pred_fallthru
      _
    %1156 = vsyncpa [#allocation3], 1

</llo_original>
